<compile_context>
chip_gen: v7x
topology: tpu7x:2x2x1
jax: 0.10.0
libtpu: 0.0.40
codegen_flags: <defaults>
</compile_context>

<pallas_src>
import functools

import jax
import jax.numpy as jnp
from jax.experimental import pallas as pl
from jax.experimental.pallas import tpu as pltpu

EPS = 1e-5
NEG_SLOPE = 0.2
LANE = 128


def _ceil_to(x, m):
    return ((x + m - 1) // m) * m


def _pick_tile(ofp):
    """Largest of (1024, 512, 256, 128) lanes that divides the padded width."""
    for t in (1024, 512, 256, 128):
        if ofp % t == 0:
            return t
    return ofp


def _bn_lrelu(h, gamma, beta):
    """Training-mode BatchNorm1d (batch stats, biased var, eps=1e-5) folded into
    one scale/shift, fused single-pass statistics, then LeakyReLU(0.2)."""
    inv_n = 1.0 / h.shape[0]
    mu = jnp.sum(h, axis=0, keepdims=True) * inv_n
    msq = jnp.sum(h * h, axis=0, keepdims=True) * inv_n
    var = jnp.maximum(msq - mu * mu, 0.0)
    scale = gamma * jax.lax.rsqrt(var + EPS)      # rsqrt -> EUP slot
    shift = beta - mu * scale
    hn = h * scale + shift
    return jnp.maximum(hn, NEG_SLOPE * hn)


def generator_kernel(
    x_ref,
    w1_ref, g1_ref, be1_ref,
    w2_ref, g2_ref, be2_ref,
    w3_ref, g3_ref, be3_ref,
    w4_ref, b4_ref,
    o_ref,
    h_scratch,
):
    j = pl.program_id(0)

    # Layers 1-3 (Linear [no bias; cancelled by BN] -> BN -> LeakyReLU) run once
    # and are cached in a bf16 VMEM scratch carried across the column-tile axis.
    @pl.when(j == 0)
    def _():
        x = x_ref[...].astype(jnp.bfloat16)
        h = jnp.dot(x, w1_ref[...], preferred_element_type=jnp.float32)
        h = _bn_lrelu(h, g1_ref[...], be1_ref[...])
        h = jnp.dot(h.astype(jnp.bfloat16), w2_ref[...],
                    preferred_element_type=jnp.float32)
        h = _bn_lrelu(h, g2_ref[...], be2_ref[...])
        h = jnp.dot(h.astype(jnp.bfloat16), w3_ref[...],
                    preferred_element_type=jnp.float32)
        h = _bn_lrelu(h, g3_ref[...], be3_ref[...])
        h_scratch[...] = h.astype(jnp.bfloat16)

    # Layer 4 column tile: (N, hp) x (hp, TN) + bias, tanh, lane-dense store.
    h4 = jnp.dot(h_scratch[...], w4_ref[...],
                 preferred_element_type=jnp.float32) + b4_ref[...]
    o_ref[...] = jnp.tanh(h4)


@functools.partial(jax.jit, static_argnames=("img_size", "out_channels"))
def generator_forward(noise, params, *, img_size, out_channels):
    """noise: (N, noise_size) f32 -> image (N, out_channels, img_size, img_size)."""
    (w1, g1, be1, w2, g2, be2, w3, g3, be3, w4, b4) = params

    n = noise.shape[0]
    noise_p = w1.shape[0]
    hp = w1.shape[1]
    ofp = w4.shape[1]                       # lane-padded output width
    out_feat = img_size * img_size * out_channels

    tn = _pick_tile(ofp)
    num_tiles = ofp // tn

    const2d = lambda shape: pl.BlockSpec(shape, lambda j: (0, 0))

    flat = pl.pallas_call(
        generator_kernel,
        out_shape=jax.ShapeDtypeStruct((n, ofp), jnp.float32),
        grid_spec=pltpu.PrefetchScalarGridSpec(
            num_scalar_prefetch=0,
            grid=(num_tiles,),
            in_specs=[
                const2d((n, noise_p)),                     # noise
                const2d((noise_p, hp)),                    # w1
                const2d((1, hp)), const2d((1, hp)),        # g1, be1
                const2d((hp, hp)),                         # w2
                const2d((1, hp)), const2d((1, hp)),        # g2, be2
                const2d((hp, hp)),                         # w3
                const2d((1, hp)), const2d((1, hp)),        # g3, be3
                pl.BlockSpec((hp, tn), lambda j: (0, j)),  # w4 column tile
                pl.BlockSpec((1, tn), lambda j: (0, j)),   # b4 column tile
            ],
            out_specs=pl.BlockSpec((n, tn), lambda j: (0, j)),
            scratch_shapes=[pltpu.VMEM((n, hp), jnp.bfloat16)],
        ),
        compiler_params=pltpu.CompilerParams(
            dimension_semantics=("arbitrary",),   # scratch carried across tiles
            vmem_limit_bytes=64 * 1024 * 1024,
        ),
    )(noise, w1, g1, be1, w2, g2, be2, w3, g3, be3, w4, b4)

    if ofp != out_feat:                     # only slice when padding exists
        flat = flat[:, :out_feat]
    # PyTorch: x.view(-1, C, H, W)
    return flat.reshape(n, out_channels, img_size, img_size)


def init_params(key, noise_size, num_hiddens, img_size, out_channels):
    """Init mimicking PyTorch defaults, pre-padded to lane-dense sizes.

    nn.Linear weight/bias ~ U(-1/sqrt(fan_in), 1/sqrt(fan_in)); BN gamma=1,
    beta=0.  Weights stored (in, out) in bfloat16 for x @ W; every output dim
    zero-padded to a multiple of 128 (next layer's input rows padded to match).
    Layers 1-3 carry no bias (exactly cancelled by training-mode BN).
    """
    out_feat = img_size * img_size * out_channels
    hp = _ceil_to(num_hiddens, LANE)
    ofp = _ceil_to(out_feat, LANE)

    dims = [
        (noise_size,  num_hiddens, noise_size, hp),
        (num_hiddens, num_hiddens, hp,         hp),
        (num_hiddens, num_hiddens, hp,         hp),
        (num_hiddens, out_feat,    hp,         ofp),
    ]

    params = []
    keys = jax.random.split(key, 2 * len(dims))
    for i, (fan_in, fan_out, in_p, out_p) in enumerate(dims):
        bound = 1.0 / (fan_in ** 0.5)
        w = jax.random.uniform(keys[2 * i], (fan_in, fan_out),
                               minval=-bound, maxval=bound, dtype=jnp.float32)
        w_p = (jnp.zeros((in_p, out_p), jnp.float32)
               .at[:fan_in, :fan_out].set(w).astype(jnp.bfloat16))
        params.append(w_p)
        if i < 3:   # BatchNorm1d gamma/beta; Linear bias dropped (cancelled)
            params.extend([jnp.ones((1, out_p), jnp.float32),
                           jnp.zeros((1, out_p), jnp.float32)])
        else:       # final layer keeps its bias (no BN after it)
            b = jax.random.uniform(keys[2 * i + 1], (1, fan_out),
                                   minval=-bound, maxval=bound,
                                   dtype=jnp.float32)
            b_p = jnp.zeros((1, out_p), jnp.float32).at[:, :fan_out].set(b)
            params.append(b_p)
    return tuple(params)


def _reference_forward(noise, params, *, img_size, out_channels):
    """Pure-JAX reference of the same math (bf16 operands, f32 accumulation)."""
    (w1, g1, be1, w2, g2, be2, w3, g3, be3, w4, b4) = params

    def dot(a, w):
        return jnp.dot(a.astype(jnp.bfloat16), w,
                       preferred_element_type=jnp.float32)

    def bn_lrelu(h, g, be):
        mu = jnp.mean(h, axis=0, keepdims=True)
        var = jnp.maximum(jnp.mean(h * h, axis=0, keepdims=True) - mu * mu, 0.0)
        hn = (h - mu) * (g * jax.lax.rsqrt(var + EPS)) + be
        return jnp.where(hn > 0, hn, NEG_SLOPE * hn)

    h = bn_lrelu(dot(noise, w1), g1, be1)
    h = bn_lrelu(dot(h, w2), g2, be2)
    h = bn_lrelu(dot(h, w3), g3, be3)
    h = jnp.tanh(dot(h, w4) + b4)
    out_feat = img_size * img_size * out_channels
    return h[:, :out_feat].reshape(-1, out_channels, img_size, img_size)


if __name__ == "__main__":
    # Small model dims; batch 128 so MXU rows are actually occupied.
    batch = 128
    noise_size = 16
    num_hiddens = 32
    img_size = 8
    out_channels = 1

    key = jax.random.PRNGKey(0)
    k_noise, k_params = jax.random.split(key)

    noise = jax.random.normal(k_noise, (batch, noise_size), dtype=jnp.float32)
    params = init_params(k_params, noise_size, num_hiddens, img_size, out_channels)

    out = generator_forward(noise, params, img_size=img_size,
                            out_channels=out_channels)
    out = jax.block_until_ready(out)

    assert out.shape == (batch, out_channels, img_size, img_size)
    assert out.dtype == jnp.float32
    # Tanh output range sanity check.
    assert float(jnp.max(jnp.abs(out))) <= 1.0 + 1e-6

    # Numerical check against a pure-JAX reference of the same math.
    ref = _reference_forward(noise, params, img_size=img_size,
                             out_channels=out_channels)
    assert bool(jnp.allclose(out, ref, rtol=5e-3, atol=5e-3))

    print("KERNEL_OK")
</pallas_src>

<mosaic_0001>
module attributes {stable_mosaic.version = 11 : i64} {
  func.func @generator_kernel(%arg0: i32, %arg1: memref<128x16xf32, #tpu.memory_space<vmem>>, %arg2: memref<16x128xbf16, #tpu.memory_space<vmem>>, %arg3: memref<1x128xf32, #tpu.memory_space<vmem>>, %arg4: memref<1x128xf32, #tpu.memory_space<vmem>>, %arg5: memref<128x128xbf16, #tpu.memory_space<vmem>>, %arg6: memref<1x128xf32, #tpu.memory_space<vmem>>, %arg7: memref<1x128xf32, #tpu.memory_space<vmem>>, %arg8: memref<128x128xbf16, #tpu.memory_space<vmem>>, %arg9: memref<1x128xf32, #tpu.memory_space<vmem>>, %arg10: memref<1x128xf32, #tpu.memory_space<vmem>>, %arg11: memref<128x128xbf16, #tpu.memory_space<vmem>>, %arg12: memref<1x128xf32, #tpu.memory_space<vmem>>, %arg13: memref<128x128xf32, #tpu.memory_space<vmem>>, %arg14: memref<128x128xbf16, #tpu.memory_space<vmem>>) attributes {dimension_semantics = [#tpu.dimension_semantics<arbitrary>], iteration_bounds = array<i64: 1>, scalar_prefetch = 0 : i64, scratch_operands = 1 : i64, tpu.core_type = #tpu.core_type<tc>, window_params = [{pipeline_mode = #tpu.pipeline_mode<synchronous>, transform_indices = @transform_0, window_bounds = array<i64: 128, 16>}, {pipeline_mode = #tpu.pipeline_mode<synchronous>, transform_indices = @transform_1, window_bounds = array<i64: 16, 128>}, {pipeline_mode = #tpu.pipeline_mode<synchronous>, transform_indices = @transform_2, window_bounds = array<i64: 1, 128>}, {pipeline_mode = #tpu.pipeline_mode<synchronous>, transform_indices = @transform_3, window_bounds = array<i64: 1, 128>}, {pipeline_mode = #tpu.pipeline_mode<synchronous>, transform_indices = @transform_4, window_bounds = array<i64: 128, 128>}, {pipeline_mode = #tpu.pipeline_mode<synchronous>, transform_indices = @transform_5, window_bounds = array<i64: 1, 128>}, {pipeline_mode = #tpu.pipeline_mode<synchronous>, transform_indices = @transform_6, window_bounds = array<i64: 1, 128>}, {pipeline_mode = #tpu.pipeline_mode<synchronous>, transform_indices = @transform_7, window_bounds = array<i64: 128, 128>}, {pipeline_mode = #tpu.pipeline_mode<synchronous>, transform_indices = @transform_8, window_bounds = array<i64: 1, 128>}, {pipeline_mode = #tpu.pipeline_mode<synchronous>, transform_indices = @transform_9, window_bounds = array<i64: 1, 128>}, {transform_indices = @transform_10, window_bounds = array<i64: 128, 128>}, {transform_indices = @transform_11, window_bounds = array<i64: 1, 128>}, {transform_indices = @transform_12, window_bounds = array<i64: 128, 128>}]} {
    %c0_i32 = arith.constant 0 : i32
    %0 = arith.cmpi eq, %arg0, %c0_i32 : i32
    %1 = arith.extui %0 : i1 to i32
    %c0_i32_0 = arith.constant 0 : i32
    %2 = arith.cmpi ne, %1, %c0_i32_0 : i32
    scf.if %2 {
      %c0_8 = arith.constant 0 : index
      %c0_9 = arith.constant 0 : index
      %11 = vector.load %arg1[%c0_8, %c0_9] : memref<128x16xf32, #tpu.memory_space<vmem>>, vector<128x16xf32>
      %12 = arith.truncf %11 : vector<128x16xf32> to vector<128x16xbf16>
      %c0_10 = arith.constant 0 : index
      %c0_11 = arith.constant 0 : index
      %13 = vector.load %arg2[%c0_10, %c0_11] : memref<16x128xbf16, #tpu.memory_space<vmem>>, vector<16x128xbf16>
      %cst_12 = arith.constant dense<0.000000e+00> : vector<128x128xf32>
      %14 = tpu.matmul %12, %13, %cst_12 {dimension_numbers = #tpu.dot_dimension_numbers<[1], [0], [0], [1], [0, 0, 1, 1], [], []>} : vector<128x16xbf16>, vector<16x128xbf16>, vector<128x128xf32> -> vector<128x128xf32>
      %c0_13 = arith.constant 0 : index
      %c0_14 = arith.constant 0 : index
      %15 = vector.load %arg3[%c0_13, %c0_14] : memref<1x128xf32, #tpu.memory_space<vmem>>, vector<1x128xf32>
      %c0_15 = arith.constant 0 : index
      %c0_16 = arith.constant 0 : index
      %16 = vector.load %arg4[%c0_15, %c0_16] : memref<1x128xf32, #tpu.memory_space<vmem>>, vector<1x128xf32>
      %cst_17 = arith.constant dense<0.000000e+00> : vector<128xf32>
      %17 = vector.multi_reduction <add>, %14, %cst_17 [0] : vector<128x128xf32> to vector<128xf32>
      %18 = vector.shape_cast %17 : vector<128xf32> to vector<1x128xf32>
      %cst_18 = arith.constant 7.812500e-03 : f32
      %19 = vector.broadcast %cst_18 : f32 to vector<1x128xf32>
      %20 = arith.mulf %18, %19 : vector<1x128xf32>
      %21 = arith.mulf %14, %14 : vector<128x128xf32>
      %cst_19 = arith.constant dense<0.000000e+00> : vector<128xf32>
      %22 = vector.multi_reduction <add>, %21, %cst_19 [0] : vector<128x128xf32> to vector<128xf32>
      %23 = vector.shape_cast %22 : vector<128xf32> to vector<1x128xf32>
      %cst_20 = arith.constant 7.812500e-03 : f32
      %24 = vector.broadcast %cst_20 : f32 to vector<1x128xf32>
      %25 = arith.mulf %23, %24 : vector<1x128xf32>
      %26 = arith.mulf %20, %20 : vector<1x128xf32>
      %27 = arith.subf %25, %26 : vector<1x128xf32>
      %cst_21 = arith.constant 0.000000e+00 : f32
      %28 = vector.broadcast %cst_21 : f32 to vector<1x128xf32>
      %29 = arith.maximumf %27, %28 : vector<1x128xf32>
      %cst_22 = arith.constant 9.99999974E-6 : f32
      %30 = vector.broadcast %cst_22 : f32 to vector<1x128xf32>
      %31 = arith.addf %29, %30 : vector<1x128xf32>
      %32 = math.rsqrt %31 : vector<1x128xf32>
      %33 = arith.mulf %15, %32 : vector<1x128xf32>
      %34 = arith.mulf %20, %33 : vector<1x128xf32>
      %35 = arith.subf %16, %34 : vector<1x128xf32>
      %36 = vector.broadcast %33 : vector<1x128xf32> to vector<128x128xf32>
      %37 = arith.mulf %14, %36 : vector<128x128xf32>
      %38 = vector.broadcast %35 : vector<1x128xf32> to vector<128x128xf32>
      %39 = arith.addf %37, %38 : vector<128x128xf32>
      %cst_23 = arith.constant 2.000000e-01 : f32
      %40 = vector.broadcast %cst_23 : f32 to vector<128x128xf32>
      %41 = arith.mulf %40, %39 : vector<128x128xf32>
      %42 = arith.maximumf %39, %41 : vector<128x128xf32>
      %43 = arith.truncf %42 : vector<128x128xf32> to vector<128x128xbf16>
      %c0_24 = arith.constant 0 : index
      %c0_25 = arith.constant 0 : index
      %44 = vector.load %arg5[%c0_24, %c0_25] : memref<128x128xbf16, #tpu.memory_space<vmem>>, vector<128x128xbf16>
      %cst_26 = arith.constant dense<0.000000e+00> : vector<128x128xf32>
      %45 = tpu.matmul %43, %44, %cst_26 {dimension_numbers = #tpu.dot_dimension_numbers<[1], [0], [0], [1], [0, 0, 1, 1], [], []>} : vector<128x128xbf16>, vector<128x128xbf16>, vector<128x128xf32> -> vector<128x128xf32>
      %c0_27 = arith.constant 0 : index
      %c0_28 = arith.constant 0 : index
      %46 = vector.load %arg6[%c0_27, %c0_28] : memref<1x128xf32, #tpu.memory_space<vmem>>, vector<1x128xf32>
      %c0_29 = arith.constant 0 : index
      %c0_30 = arith.constant 0 : index
      %47 = vector.load %arg7[%c0_29, %c0_30] : memref<1x128xf32, #tpu.memory_space<vmem>>, vector<1x128xf32>
      %cst_31 = arith.constant dense<0.000000e+00> : vector<128xf32>
      %48 = vector.multi_reduction <add>, %45, %cst_31 [0] : vector<128x128xf32> to vector<128xf32>
      %49 = vector.shape_cast %48 : vector<128xf32> to vector<1x128xf32>
      %cst_32 = arith.constant 7.812500e-03 : f32
      %50 = vector.broadcast %cst_32 : f32 to vector<1x128xf32>
      %51 = arith.mulf %49, %50 : vector<1x128xf32>
      %52 = arith.mulf %45, %45 : vector<128x128xf32>
      %cst_33 = arith.constant dense<0.000000e+00> : vector<128xf32>
      %53 = vector.multi_reduction <add>, %52, %cst_33 [0] : vector<128x128xf32> to vector<128xf32>
      %54 = vector.shape_cast %53 : vector<128xf32> to vector<1x128xf32>
      %cst_34 = arith.constant 7.812500e-03 : f32
      %55 = vector.broadcast %cst_34 : f32 to vector<1x128xf32>
      %56 = arith.mulf %54, %55 : vector<1x128xf32>
      %57 = arith.mulf %51, %51 : vector<1x128xf32>
      %58 = arith.subf %56, %57 : vector<1x128xf32>
      %cst_35 = arith.constant 0.000000e+00 : f32
      %59 = vector.broadcast %cst_35 : f32 to vector<1x128xf32>
      %60 = arith.maximumf %58, %59 : vector<1x128xf32>
      %cst_36 = arith.constant 9.99999974E-6 : f32
      %61 = vector.broadcast %cst_36 : f32 to vector<1x128xf32>
      %62 = arith.addf %60, %61 : vector<1x128xf32>
      %63 = math.rsqrt %62 : vector<1x128xf32>
      %64 = arith.mulf %46, %63 : vector<1x128xf32>
      %65 = arith.mulf %51, %64 : vector<1x128xf32>
      %66 = arith.subf %47, %65 : vector<1x128xf32>
      %67 = vector.broadcast %64 : vector<1x128xf32> to vector<128x128xf32>
      %68 = arith.mulf %45, %67 : vector<128x128xf32>
      %69 = vector.broadcast %66 : vector<1x128xf32> to vector<128x128xf32>
      %70 = arith.addf %68, %69 : vector<128x128xf32>
      %cst_37 = arith.constant 2.000000e-01 : f32
      %71 = vector.broadcast %cst_37 : f32 to vector<128x128xf32>
      %72 = arith.mulf %71, %70 : vector<128x128xf32>
      %73 = arith.maximumf %70, %72 : vector<128x128xf32>
      %74 = arith.truncf %73 : vector<128x128xf32> to vector<128x128xbf16>
      %c0_38 = arith.constant 0 : index
      %c0_39 = arith.constant 0 : index
      %75 = vector.load %arg8[%c0_38, %c0_39] : memref<128x128xbf16, #tpu.memory_space<vmem>>, vector<128x128xbf16>
      %cst_40 = arith.constant dense<0.000000e+00> : vector<128x128xf32>
      %76 = tpu.matmul %74, %75, %cst_40 {dimension_numbers = #tpu.dot_dimension_numbers<[1], [0], [0], [1], [0, 0, 1, 1], [], []>} : vector<128x128xbf16>, vector<128x128xbf16>, vector<128x128xf32> -> vector<128x128xf32>
      %c0_41 = arith.constant 0 : index
      %c0_42 = arith.constant 0 : index
      %77 = vector.load %arg9[%c0_41, %c0_42] : memref<1x128xf32, #tpu.memory_space<vmem>>, vector<1x128xf32>
      %c0_43 = arith.constant 0 : index
      %c0_44 = arith.constant 0 : index
      %78 = vector.load %arg10[%c0_43, %c0_44] : memref<1x128xf32, #tpu.memory_space<vmem>>, vector<1x128xf32>
      %cst_45 = arith.constant dense<0.000000e+00> : vector<128xf32>
      %79 = vector.multi_reduction <add>, %76, %cst_45 [0] : vector<128x128xf32> to vector<128xf32>
      %80 = vector.shape_cast %79 : vector<128xf32> to vector<1x128xf32>
      %cst_46 = arith.constant 7.812500e-03 : f32
      %81 = vector.broadcast %cst_46 : f32 to vector<1x128xf32>
      %82 = arith.mulf %80, %81 : vector<1x128xf32>
      %83 = arith.mulf %76, %76 : vector<128x128xf32>
      %cst_47 = arith.constant dense<0.000000e+00> : vector<128xf32>
      %84 = vector.multi_reduction <add>, %83, %cst_47 [0] : vector<128x128xf32> to vector<128xf32>
      %85 = vector.shape_cast %84 : vector<128xf32> to vector<1x128xf32>
      %cst_48 = arith.constant 7.812500e-03 : f32
      %86 = vector.broadcast %cst_48 : f32 to vector<1x128xf32>
      %87 = arith.mulf %85, %86 : vector<1x128xf32>
      %88 = arith.mulf %82, %82 : vector<1x128xf32>
      %89 = arith.subf %87, %88 : vector<1x128xf32>
      %cst_49 = arith.constant 0.000000e+00 : f32
      %90 = vector.broadcast %cst_49 : f32 to vector<1x128xf32>
      %91 = arith.maximumf %89, %90 : vector<1x128xf32>
      %cst_50 = arith.constant 9.99999974E-6 : f32
      %92 = vector.broadcast %cst_50 : f32 to vector<1x128xf32>
      %93 = arith.addf %91, %92 : vector<1x128xf32>
      %94 = math.rsqrt %93 : vector<1x128xf32>
      %95 = arith.mulf %77, %94 : vector<1x128xf32>
      %96 = arith.mulf %82, %95 : vector<1x128xf32>
      %97 = arith.subf %78, %96 : vector<1x128xf32>
      %98 = vector.broadcast %95 : vector<1x128xf32> to vector<128x128xf32>
      %99 = arith.mulf %76, %98 : vector<128x128xf32>
      %100 = vector.broadcast %97 : vector<1x128xf32> to vector<128x128xf32>
      %101 = arith.addf %99, %100 : vector<128x128xf32>
      %cst_51 = arith.constant 2.000000e-01 : f32
      %102 = vector.broadcast %cst_51 : f32 to vector<128x128xf32>
      %103 = arith.mulf %102, %101 : vector<128x128xf32>
      %104 = arith.maximumf %101, %103 : vector<128x128xf32>
      %105 = arith.truncf %104 : vector<128x128xf32> to vector<128x128xbf16>
      %c0_52 = arith.constant 0 : index
      %c0_53 = arith.constant 0 : index
      %106 = vector.load %arg14[%c0_52, %c0_53] : memref<128x128xbf16, #tpu.memory_space<vmem>>, vector<128x128xbf16>
      tpu.vector_store %arg14[%c0_52, %c0_53], %105 {strides = array<i32>} : memref<128x128xbf16, #tpu.memory_space<vmem>>, vector<128x128xbf16>,
    } else {
    }
    %c0 = arith.constant 0 : index
    %c0_1 = arith.constant 0 : index
    %3 = vector.load %arg14[%c0, %c0_1] : memref<128x128xbf16, #tpu.memory_space<vmem>>, vector<128x128xbf16>
    %c0_2 = arith.constant 0 : index
    %c0_3 = arith.constant 0 : index
    %4 = vector.load %arg11[%c0_2, %c0_3] : memref<128x128xbf16, #tpu.memory_space<vmem>>, vector<128x128xbf16>
    %cst = arith.constant dense<0.000000e+00> : vector<128x128xf32>
    %5 = tpu.matmul %3, %4, %cst {dimension_numbers = #tpu.dot_dimension_numbers<[1], [0], [0], [1], [0, 0, 1, 1], [], []>} : vector<128x128xbf16>, vector<128x128xbf16>, vector<128x128xf32> -> vector<128x128xf32>
    %c0_4 = arith.constant 0 : index
    %c0_5 = arith.constant 0 : index
    %6 = vector.load %arg12[%c0_4, %c0_5] : memref<1x128xf32, #tpu.memory_space<vmem>>, vector<1x128xf32>
    %7 = vector.broadcast %6 : vector<1x128xf32> to vector<128x128xf32>
    %8 = arith.addf %5, %7 : vector<128x128xf32>
    %9 = math.tanh %8 : vector<128x128xf32>
    %c0_6 = arith.constant 0 : index
    %c0_7 = arith.constant 0 : index
    %10 = vector.load %arg13[%c0_6, %c0_7] : memref<128x128xf32, #tpu.memory_space<vmem>>, vector<128x128xf32>
    tpu.vector_store %arg13[%c0_6, %c0_7], %9 {strides = array<i32>} : memref<128x128xf32, #tpu.memory_space<vmem>>, vector<128x128xf32>,
    return
  }
  func.func @transform_0(%arg0: i32) -> (i32, i32) {
    %c0_i32 = arith.constant 0 : i32
    %c0_i32_0 = arith.constant 0 : i32
    %c0_i32_1 = arith.constant 0 : i32
    return %c0_i32, %c0_i32_0 : i32, i32
  }
  func.func @transform_1(%arg0: i32) -> (i32, i32) {
    %c0_i32 = arith.constant 0 : i32
    %c0_i32_0 = arith.constant 0 : i32
    %c0_i32_1 = arith.constant 0 : i32
    return %c0_i32, %c0_i32_0 : i32, i32
  }
  func.func @transform_2(%arg0: i32) -> (i32, i32) {
    %c0_i32 = arith.constant 0 : i32
    %c0_i32_0 = arith.constant 0 : i32
    %c0_i32_1 = arith.constant 0 : i32
    return %c0_i32, %c0_i32_0 : i32, i32
  }
  func.func @transform_3(%arg0: i32) -> (i32, i32) {
    %c0_i32 = arith.constant 0 : i32
    %c0_i32_0 = arith.constant 0 : i32
    %c0_i32_1 = arith.constant 0 : i32
    return %c0_i32, %c0_i32_0 : i32, i32
  }
  func.func @transform_4(%arg0: i32) -> (i32, i32) {
    %c0_i32 = arith.constant 0 : i32
    %c0_i32_0 = arith.constant 0 : i32
    %c0_i32_1 = arith.constant 0 : i32
    return %c0_i32, %c0_i32_0 : i32, i32
  }
  func.func @transform_5(%arg0: i32) -> (i32, i32) {
    %c0_i32 = arith.constant 0 : i32
    %c0_i32_0 = arith.constant 0 : i32
    %c0_i32_1 = arith.constant 0 : i32
    return %c0_i32, %c0_i32_0 : i32, i32
  }
  func.func @transform_6(%arg0: i32) -> (i32, i32) {
    %c0_i32 = arith.constant 0 : i32
    %c0_i32_0 = arith.constant 0 : i32
    %c0_i32_1 = arith.constant 0 : i32
    return %c0_i32, %c0_i32_0 : i32, i32
  }
  func.func @transform_7(%arg0: i32) -> (i32, i32) {
    %c0_i32 = arith.constant 0 : i32
    %c0_i32_0 = arith.constant 0 : i32
    %c0_i32_1 = arith.constant 0 : i32
    return %c0_i32, %c0_i32_0 : i32, i32
  }
  func.func @transform_8(%arg0: i32) -> (i32, i32) {
    %c0_i32 = arith.constant 0 : i32
    %c0_i32_0 = arith.constant 0 : i32
    %c0_i32_1 = arith.constant 0 : i32
    return %c0_i32, %c0_i32_0 : i32, i32
  }
  func.func @transform_9(%arg0: i32) -> (i32, i32) {
    %c0_i32 = arith.constant 0 : i32
    %c0_i32_0 = arith.constant 0 : i32
    %c0_i32_1 = arith.constant 0 : i32
    return %c0_i32, %c0_i32_0 : i32, i32
  }
  func.func @transform_10(%arg0: i32) -> (i32, i32) {
    %c0_i32 = arith.constant 0 : i32
    %c0_i32_0 = arith.constant 0 : i32
    return %c0_i32, %arg0 : i32, i32
  }
  func.func @transform_11(%arg0: i32) -> (i32, i32) {
    %c0_i32 = arith.constant 0 : i32
    %c0_i32_0 = arith.constant 0 : i32
    return %c0_i32, %arg0 : i32, i32
  }
  func.func @transform_12(%arg0: i32) -> (i32, i32) {
    %c0_i32 = arith.constant 0 : i32
    %c0_i32_0 = arith.constant 0 : i32
    return %c0_i32, %arg0 : i32, i32
  }
}

</mosaic_0001>

<llo_original>
// kernel: generator_forward.1
$region0: #{generator_forward.1}
  #allocation0 [shape = 'u32[]', space=smem, size = 0x4, offset = 0x4, fixed_abs, tag = 'smem constant byte address 0x4 - core index']
  #allocation1 [shape = 'u32[144,128]{1,0:T(1,128)}', space=vmem, size = 0x12000, scoped, tag = 'internal scratch']
  #allocation2 [shape = 'bf16[128,128]{1,0:T(16,128)(2,1)}', space=vmem, size = 0x8000, scoped, tag = 'scratch operand']
  %s0 = inlined_call_operand.hbm [shape: f32[128,16], index: 0, kind: input, shape index: {}]
  %s1 = inlined_call_operand.hbm [shape: bf16[16,128], index: 1, kind: input, shape index: {}]
  %s2 = inlined_call_operand.hbm [shape: f32[1,128], index: 2, kind: input, shape index: {}]
  %s3 = inlined_call_operand.hbm [shape: f32[1,128], index: 3, kind: input, shape index: {}]
  %s4 = inlined_call_operand.hbm [shape: bf16[128,128], index: 4, kind: input, shape index: {}]
  %s5 = inlined_call_operand.hbm [shape: f32[1,128], index: 5, kind: input, shape index: {}]
  %s6 = inlined_call_operand.hbm [shape: f32[1,128], index: 6, kind: input, shape index: {}]
  %s7 = inlined_call_operand.hbm [shape: bf16[128,128], index: 7, kind: input, shape index: {}]
  %s8 = inlined_call_operand.hbm [shape: f32[1,128], index: 8, kind: input, shape index: {}]
  %s9 = inlined_call_operand.hbm [shape: f32[1,128], index: 9, kind: input, shape index: {}]
  %s10 = inlined_call_operand.hbm [shape: bf16[128,128], index: 10, kind: input, shape index: {}]
  %s11 = inlined_call_operand.hbm [shape: f32[1,128], index: 11, kind: input, shape index: {}]
  %s12 = inlined_call_operand.hbm [shape: f32[128,128], index: 12, kind: output, shape index: {}]
  %s13 = sld [smem:[#allocation0]]
  $region110: #{generator_forward.1} parent=0
    _
  %s15 = ssub.s32 1, %s13
  %s16 = scalar_select 0, %s15, %s13
  $region1: #{generator_forward.1} parent=0
    #allocation3 [shape = 'u8[65536]{0}', space=vmem, size = 0x10000, scoped, tag = 'input window, operand 0, single buffered']
    #allocation4 [shape = 's32[1]{0}', space=sflag, size = 0x4, scoped, tag = 'scoped memory for generator_forward.1']
    #allocation5 [shape = 's32[1]{0}', space=sflag, size = 0x4, scoped, tag = 'scoped memory for generator_forward.1']
    #allocation6 [shape = 'u8[4096]{0}', space=vmem, size = 0x1000, scoped, tag = 'input window, operand 1, single buffered']
    #allocation7 [shape = 's32[1]{0}', space=sflag, size = 0x4, scoped, tag = 'scoped memory for generator_forward.1']
    #allocation8 [shape = 'u8[512]{0}', space=vmem, size = 0x400, scoped, tag = 'input window, operand 2, single buffered']
    #allocation9 [shape = 'u8[512]{0}', space=vmem, size = 0x400, scoped, tag = 'input window, operand 3, single buffered']
    #allocation10 [shape = 's32[1]{0}', space=sflag, size = 0x4, scoped, tag = 'scoped memory for generator_forward.1']
    #allocation11 [shape = 'u8[32768]{0}', space=vmem, size = 0x8000, scoped, tag = 'input window, operand 4, single buffered']
    #allocation12 [shape = 'u8[512]{0}', space=vmem, size = 0x400, scoped, tag = 'input window, operand 5, single buffered']
    #allocation13 [shape = 's32[1]{0}', space=sflag, size = 0x4, scoped, tag = 'scoped memory for generator_forward.1']
    #allocation14 [shape = 'u8[512]{0}', space=vmem, size = 0x400, scoped, tag = 'input window, operand 6, single buffered']
    #allocation15 [shape = 'u8[32768]{0}', space=vmem, size = 0x8000, scoped, tag = 'input window, operand 7, single buffered']
    #allocation16 [shape = 's32[1]{0}', space=sflag, size = 0x4, scoped, tag = 'scoped memory for generator_forward.1']
    #allocation17 [shape = 'u8[512]{0}', space=vmem, size = 0x400, scoped, tag = 'input window, operand 8, single buffered']
    #allocation18 [shape = 'u8[512]{0}', space=vmem, size = 0x400, scoped, tag = 'input window, operand 9, single buffered']
    #allocation19 [shape = 's32[1]{0}', space=sflag, size = 0x4, scoped, tag = 'scoped memory for generator_forward.1']
    #allocation20 [shape = 'u8[32768]{0}', space=vmem, size = 0x8000, scoped, tag = 'input window, operand 10, single buffered']
    #allocation21 [shape = 'u8[512]{0}', space=vmem, size = 0x400, scoped, tag = 'input window, operand 11, single buffered']
    #allocation22 [shape = 's32[1]{0}', space=sflag, size = 0x4, scoped, tag = 'scoped memory for generator_forward.1']
    #allocation23 [shape = 'u8[65536]{0}', space=vmem, size = 0x10000, scoped, tag = 'output window, operand 0, single buffered']
    %17 = vsyncpa [#allocation4], 0
    %18 = vsyncpa [#allocation7], 0
    %19 = vsyncpa [#allocation10], 0
    %20 = vsyncpa [#allocation13], 0
    %21 = vsyncpa [#allocation16], 0
    %22 = vsyncpa [#allocation19], 0
    %23 = vsyncpa [#allocation22], 0
    %24 = vsyncpa [#allocation5], 0
    // Predicated region
    $region2: #{generator_forward.1} parent=1 // pred_check
      _
    $region3: #{generator_forward.1} parent=1 // pred_check_branch
      %26 = sbr.rel (0) target = $region5
    $region4: #{generator_forward.1} parent=1 // pred_region
      %s28 = ssub.s32 2048, 2048
      %29 = vsyncadd [#allocation4], %s28
      %s30 = sshll.u32 [#allocation3], 4
      %s31 = int_to_ptr.vmem [resolvable:$true] %s30
      %36 = dma.hbm_to_vmem [thread:$0]  %s0, 2048, %s31, [#allocation4], 128, 128, 8
    $region5: #{generator_forward.1} parent=1 // pred_fallthru
      _
    // Predicated region
    $region6: #{generator_forward.1} parent=1 // pred_check
      _
    $region7: #{generator_forward.1} parent=1 // pred_check_branch
      %38 = sbr.rel (0) target = $region9
    $region8: #{generator_forward.1} parent=1 // pred_region
      %s40 = ssub.s32 128, 128
      %41 = vsyncadd [#allocation7], %s40
      %s42 = sshll.u32 [#allocation6], 4
      %s43 = int_to_ptr.vmem [resolvable:$true] %s42
      %48 = dma.hbm_to_vmem [thread:$0]  %s1, 128, %s43, [#allocation7], 64, 64, 4
    $region9: #{generator_forward.1} parent=1 // pred_fallthru
      _
    // Predicated region
    $region10: #{generator_forward.1} parent=1 // pred_check
      _
    $region11: #{generator_forward.1} parent=1 // pred_check_branch
      %50 = sbr.rel (0) target = $region13
    $region12: #{generator_forward.1} parent=1 // pred_region
      %s52 = ssub.s32 16, 16
      %53 = vsyncadd [#allocation7], %s52
      %s55 = sshll.u32 [#allocation8], 4
      %s56 = int_to_ptr.vmem [resolvable:$true] %s55
      %58 = dma.hbm_to_vmem [thread:$0]  %s2, 16, %s56, [#allocation7]
    $region13: #{generator_forward.1} parent=1 // pred_fallthru
      _
    // Predicated region
    $region14: #{generator_forward.1} parent=1 // pred_check
      _
    $region15: #{generator_forward.1} parent=1 // pred_check_branch
      %60 = sbr.rel (0) target = $region17
    $region16: #{generator_forward.1} parent=1 // pred_region
      %s62 = ssub.s32 16, 16
      %63 = vsyncadd [#allocation10], %s62
      %s65 = sshll.u32 [#allocation9], 4
      %s66 = int_to_ptr.vmem [resolvable:$true] %s65
      %68 = dma.hbm_to_vmem [thread:$0]  %s3, 16, %s66, [#allocation10]
    $region17: #{generator_forward.1} parent=1 // pred_fallthru
      _
    // Predicated region
    $region18: #{generator_forward.1} parent=1 // pred_check
      _
    $region19: #{generator_forward.1} parent=1 // pred_check_branch
      %70 = sbr.rel (0) target = $region21
    $region20: #{generator_forward.1} parent=1 // pred_region
      %s72 = ssub.s32 1024, 1024
      %73 = vsyncadd [#allocation10], %s72
      %s74 = sshll.u32 [#allocation11], 4
      %s75 = int_to_ptr.vmem [resolvable:$true] %s74
      %80 = dma.hbm_to_vmem [thread:$0]  %s4, 1024, %s75, [#allocation10], 64, 64, 4
    $region21: #{generator_forward.1} parent=1 // pred_fallthru
      _
    // Predicated region
    $region22: #{generator_forward.1} parent=1 // pred_check
      _
    $region23: #{generator_forward.1} parent=1 // pred_check_branch
      %82 = sbr.rel (0) target = $region25
    $region24: #{generator_forward.1} parent=1 // pred_region
      %s84 = ssub.s32 16, 16
      %85 = vsyncadd [#allocation13], %s84
      %s87 = sshll.u32 [#allocation12], 4
      %s88 = int_to_ptr.vmem [resolvable:$true] %s87
      %90 = dma.hbm_to_vmem [thread:$0]  %s5, 16, %s88, [#allocation13]
    $region25: #{generator_forward.1} parent=1 // pred_fallthru
      _
    // Predicated region
    $region26: #{generator_forward.1} parent=1 // pred_check
      _
    $region27: #{generator_forward.1} parent=1 // pred_check_branch
      %92 = sbr.rel (0) target = $region29
    $region28: #{generator_forward.1} parent=1 // pred_region
      %s94 = ssub.s32 16, 16
      %95 = vsyncadd [#allocation13], %s94
      %s97 = sshll.u32 [#allocation14], 4
      %s98 = int_to_ptr.vmem [resolvable:$true] %s97
      %100 = dma.hbm_to_vmem [thread:$0]  %s6, 16, %s98, [#allocation13]
    $region29: #{generator_forward.1} parent=1 // pred_fallthru
      _
    // Predicated region
    $region30: #{generator_forward.1} parent=1 // pred_check
      _
    $region31: #{generator_forward.1} parent=1 // pred_check_branch
      %102 = sbr.rel (0) target = $region33
    $region32: #{generator_forward.1} parent=1 // pred_region
      %s104 = ssub.s32 1024, 1024
      %105 = vsyncadd [#allocation16], %s104
      %s106 = sshll.u32 [#allocation15], 4
      %s107 = int_to_ptr.vmem [resolvable:$true] %s106
      %112 = dma.hbm_to_vmem [thread:$0]  %s7, 1024, %s107, [#allocation16], 64, 64, 4
    $region33: #{generator_forward.1} parent=1 // pred_fallthru
      _
    // Predicated region
    $region34: #{generator_forward.1} parent=1 // pred_check
      _
    $region35: #{generator_forward.1} parent=1 // pred_check_branch
      %114 = sbr.rel (0) target = $region37
    $region36: #{generator_forward.1} parent=1 // pred_region
      %s116 = ssub.s32 16, 16
      %117 = vsyncadd [#allocation16], %s116
      %s119 = sshll.u32 [#allocation17], 4
      %s120 = int_to_ptr.vmem [resolvable:$true] %s119
      %122 = dma.hbm_to_vmem [thread:$0]  %s8, 16, %s120, [#allocation16]
    $region37: #{generator_forward.1} parent=1 // pred_fallthru
      _
    // Predicated region
    $region38: #{generator_forward.1} parent=1 // pred_check
      _
    $region39: #{generator_forward.1} parent=1 // pred_check_branch
      %124 = sbr.rel (0) target = $region41
    $region40: #{generator_forward.1} parent=1 // pred_region
      %s126 = ssub.s32 16, 16
      %127 = vsyncadd [#allocation19], %s126
      %s129 = sshll.u32 [#allocation18], 4
      %s130 = int_to_ptr.vmem [resolvable:$true] %s129
      %132 = dma.hbm_to_vmem [thread:$0]  %s9, 16, %s130, [#allocation19]
    $region41: #{generator_forward.1} parent=1 // pred_fallthru
      _
    // Predicated region
    $region42: #{generator_forward.1} parent=1 // pred_check
      _
    $region43: #{generator_forward.1} parent=1 // pred_check_branch
      %134 = sbr.rel (0) target = $region45
    $region44: #{generator_forward.1} parent=1 // pred_region
      %s136 = ssub.s32 1024, 1024
      %137 = vsyncadd [#allocation19], %s136
      %s138 = sshll.u32 [#allocation20], 4
      %s139 = int_to_ptr.vmem [resolvable:$true] %s138
      %144 = dma.hbm_to_vmem [thread:$0]  %s10, 1024, %s139, [#allocation19], 64, 64, 4
    $region45: #{generator_forward.1} parent=1 // pred_fallthru
      _
    // Predicated region
    $region46: #{generator_forward.1} parent=1 // pred_check
      _
    $region47: #{generator_forward.1} parent=1 // pred_check_branch
      %146 = sbr.rel (0) target = $region49
    $region48: #{generator_forward.1} parent=1 // pred_region
      %s148 = ssub.s32 16, 16
      %149 = vsyncadd [#allocation22], %s148
      %s151 = sshll.u32 [#allocation21], 4
      %s152 = int_to_ptr.vmem [resolvable:$true] %s151
      %154 = dma.hbm_to_vmem [thread:$0]  %s11, 16, %s152, [#allocation22]
    $region49: #{generator_forward.1} parent=1 // pred_fallthru
      _
    // Predicated region
    $region50: #{generator_forward.1} parent=1 // pred_check
      _
    $region51: #{generator_forward.1} parent=1 // pred_check_branch
      %156 = sbr.rel (0) target = $region53
    $region52: #{generator_forward.1} parent=1 // pred_region
      %157 = dma.done [#allocation4], 2048
    $region53: #{generator_forward.1} parent=1 // pred_fallthru
      _
    // Predicated region
    $region54: #{generator_forward.1} parent=1 // pred_check
      _
    $region55: #{generator_forward.1} parent=1 // pred_check_branch
      %159 = sbr.rel (0) target = $region57
    $region56: #{generator_forward.1} parent=1 // pred_region
      %160 = dma.done [#allocation7], 128
    $region57: #{generator_forward.1} parent=1 // pred_fallthru
      _
    // Predicated region
    $region58: #{generator_forward.1} parent=1 // pred_check
      _
    $region59: #{generator_forward.1} parent=1 // pred_check_branch
      %162 = sbr.rel (0) target = $region61
    $region60: #{generator_forward.1} parent=1 // pred_region
      %163 = dma.done [#allocation7], 16
    $region61: #{generator_forward.1} parent=1 // pred_fallthru
      _
    // Predicated region
    $region62: #{generator_forward.1} parent=1 // pred_check
      _
    $region63: #{generator_forward.1} parent=1 // pred_check_branch
      %165 = sbr.rel (0) target = $region65
    $region64: #{generator_forward.1} parent=1 // pred_region
      %166 = dma.done [#allocation10], 16
    $region65: #{generator_forward.1} parent=1 // pred_fallthru
      _
    // Predicated region
    $region66: #{generator_forward.1} parent=1 // pred_check
      _
    $region67: #{generator_forward.1} parent=1 // pred_check_branch
      %168 = sbr.rel (0) target = $region69
    $region68: #{generator_forward.1} parent=1 // pred_region
      %169 = dma.done [#allocation10], 1024
    $region69: #{generator_forward.1} parent=1 // pred_fallthru
      _
    // Predicated region
    $region70: #{generator_forward.1} parent=1 // pred_check
      _
    $region71: #{generator_forward.1} parent=1 // pred_check_branch
      %171 = sbr.rel (0) target = $region73
    $region72: #{generator_forward.1} parent=1 // pred_region
      %172 = dma.done [#allocation13], 16
    $region73: #{generator_forward.1} parent=1 // pred_fallthru
      _
    // Predicated region
    $region74: #{generator_forward.1} parent=1 // pred_check
      _
    $region75: #{generator_forward.1} parent=1 // pred_check_branch
      %174 = sbr.rel (0) target = $region77
    $region76: #{generator_forward.1} parent=1 // pred_region
      %175 = dma.done [#allocation13], 16
    $region77: #{generator_forward.1} parent=1 // pred_fallthru
      _
    // Predicated region
    $region78: #{generator_forward.1} parent=1 // pred_check
      _
    $region79: #{generator_forward.1} parent=1 // pred_check_branch
      %177 = sbr.rel (0) target = $region81
    $region80: #{generator_forward.1} parent=1 // pred_region
      %178 = dma.done [#allocation16], 1024
    $region81: #{generator_forward.1} parent=1 // pred_fallthru
      _
    // Predicated region
    $region82: #{generator_forward.1} parent=1 // pred_check
      _
    $region83: #{generator_forward.1} parent=1 // pred_check_branch
      %180 = sbr.rel (0) target = $region85
    $region84: #{generator_forward.1} parent=1 // pred_region
      %181 = dma.done [#allocation16], 16
    $region85: #{generator_forward.1} parent=1 // pred_fallthru
      _
    // Predicated region
    $region86: #{generator_forward.1} parent=1 // pred_check
      _
    $region87: #{generator_forward.1} parent=1 // pred_check_branch
      %183 = sbr.rel (0) target = $region89
    $region88: #{generator_forward.1} parent=1 // pred_region
      %184 = dma.done [#allocation19], 16
    $region89: #{generator_forward.1} parent=1 // pred_fallthru
      _
    // Predicated region
    $region90: #{generator_forward.1} parent=1 // pred_check
      _
    $region91: #{generator_forward.1} parent=1 // pred_check_branch
      %186 = sbr.rel (0) target = $region93
    $region92: #{generator_forward.1} parent=1 // pred_region
      %187 = dma.done [#allocation19], 1024
    $region93: #{generator_forward.1} parent=1 // pred_fallthru
      _
    // Predicated region
    $region94: #{generator_forward.1} parent=1 // pred_check
      _
    $region95: #{generator_forward.1} parent=1 // pred_check_branch
      %189 = sbr.rel (0) target = $region97
    $region96: #{generator_forward.1} parent=1 // pred_region
      %190 = dma.done [#allocation22], 16
    $region97: #{generator_forward.1} parent=1 // pred_fallthru
      _
    %p192 = scmp.eq.s32.totalorder 0, 0
    // Predicated region
    $region98: #{generator_forward.1} parent=1 // pred_check
      %p193 = pneg %p192
    $region99: #{generator_forward.1} parent=1 // pred_check_branch
      %195 = sbr.rel (%p193) target = $region101
    $region100: #{generator_forward.1} parent=1 // pred_region
      %v196 = vld [vmem:[#allocation3] sm:$0xff]
      %v197 = vld [vmem:[#allocation3 + $0x8] sm:$0xff]
      %v198 = vld [vmem:[#allocation3 + $0x10] sm:$0xff]
      %v199 = vld [vmem:[#allocation3 + $0x18] sm:$0xff]
      %v200 = vld [vmem:[#allocation3 + $0x20] sm:$0xff]
      %v201 = vld [vmem:[#allocation3 + $0x28] sm:$0xff]
      %v202 = vld [vmem:[#allocation3 + $0x30] sm:$0xff]
      %v203 = vld [vmem:[#allocation3 + $0x38] sm:$0xff]
      %v204 = vld [vmem:[#allocation3 + $0x40] sm:$0xff]
      %v205 = vld [vmem:[#allocation3 + $0x48] sm:$0xff]
      %v206 = vld [vmem:[#allocation3 + $0x50] sm:$0xff]
      %v207 = vld [vmem:[#allocation3 + $0x58] sm:$0xff]
      %v208 = vld [vmem:[#allocation3 + $0x60] sm:$0xff]
      %v209 = vld [vmem:[#allocation3 + $0x68] sm:$0xff]
      %v210 = vld [vmem:[#allocation3 + $0x70] sm:$0xff]
      %v211 = vld [vmem:[#allocation3 + $0x78] sm:$0xff]
      %v212 = vpack.c.bf16 %v197, %v196
      %v213 = vpack.c.bf16 %v199, %v198
      %v214 = vpack.c.bf16 %v201, %v200
      %v215 = vpack.c.bf16 %v203, %v202
      %v216 = vpack.c.bf16 %v205, %v204
      %v217 = vpack.c.bf16 %v207, %v206
      %v218 = vpack.c.bf16 %v209, %v208
      %v219 = vpack.c.bf16 %v211, %v210
      %v220 = vld [vmem:[#allocation6] sm:$0xf]
      %v221 = vld [vmem:[#allocation6 + $0x4] sm:$0xf]
      %v224 = vunpack.c.l.b16 %v220
      %v225 = vunpack.c.l.b16 %v221
      %v226 = vpack.c.b16 %v225, %v224
      %vm228 = vcmask 130048
      %v230 = vsel %vm228, %v212, 0
      %v233 = vsel %vm228, %v213, 0
      %v236 = vsel %vm228, %v214, 0
      %v239 = vsel %vm228, %v215, 0
      %v242 = vsel %vm228, %v216, 0
      %v245 = vsel %vm228, %v217, 0
      %v248 = vsel %vm228, %v218, 0
      %v251 = vsel %vm228, %v219, 0
      %253 = vmatprep.subr.bf16.mxu0 0
      %254 = vmatpush1.bf16.msra.mxu0 %v226
      %255 = vmatprep.subr.bf16.mxu0 0
      %256 = vmatpush1.bf16.msra.mxu0 0
      %257 = vmatprep.subr.bf16.mxu0 0
      %258 = vmatpush1.bf16.msra.mxu0 0
      %259 = vmatprep.subr.bf16.mxu0 0
      %260 = vmatpush1.bf16.msra.mxu0 0
      %261 = vmatprep.subr.bf16.mxu0 0
      %262 = vmatpush1.bf16.msra.mxu0 0
      %263 = vmatprep.subr.bf16.mxu0 0
      %264 = vmatpush1.bf16.msra.mxu0 0
      %265 = vmatprep.subr.bf16.mxu0 0
      %266 = vmatpush1.bf16.msra.mxu0 0
      %267 = vmatprep.subr.bf16.mxu0 0
      %268 = vmatpush1.bf16.msra.mxu0 0
      %269 = vmatprep.subr.bf16.mxu0 0
      %270 = vmatpush1.bf16.msra.mxu0 0
      %271 = vmatprep.subr.bf16.mxu0 0
      %272 = vmatpush1.bf16.msra.mxu0 0
      %273 = vmatprep.subr.bf16.mxu0 0
      %274 = vmatpush1.bf16.msra.mxu0 0
      %275 = vmatprep.subr.bf16.mxu0 0
      %276 = vmatpush1.bf16.msra.mxu0 0
      %277 = vmatprep.subr.bf16.mxu0 0
      %278 = vmatpush1.bf16.msra.mxu0 0
      %279 = vmatprep.subr.bf16.mxu0 0
      %280 = vmatpush1.bf16.msra.mxu0 0
      %281 = vmatprep.subr.bf16.mxu0 0
      %282 = vmatpush1.bf16.msra.mxu0 0
      %283 = vmatprep.subr.bf16.mxu0 0
      %284 = vmatpush1.bf16.msra.mxu0 0
      %285 = vmatprep.mubr.bf16.mxu0 0
      %286 = vmatmul.mubr.bf16.gmra.mrb[0].mxu0 %v230
      %v287 = vpop.f32.mrb[0].mxu0
      %v288 = vadd.f32 0.0, %v287
      %v289 = vpop.f32.mrb[0].mxu0
      %v290 = vpop.f32.mrb[0].mxu0
      %v291 = vadd.f32 0.0, %v290
      %v292 = vpop.f32.mrb[0].mxu0
      %293 = vmatprep.mubr.bf16.mxu0 0
      %294 = vmatmul.mubr.bf16.gmra.mrb[0].mxu0 %v233
      %v295 = vpop.f32.mrb[0].mxu0
      %v296 = vadd.f32 0.0, %v295
      %v297 = vpop.f32.mrb[0].mxu0
      %v298 = vpop.f32.mrb[0].mxu0
      %v299 = vadd.f32 0.0, %v298
      %v300 = vpop.f32.mrb[0].mxu0
      %301 = vmatprep.mubr.bf16.mxu0 0
      %302 = vmatmul.mubr.bf16.gmra.mrb[0].mxu0 %v236
      %v303 = vpop.f32.mrb[0].mxu0
      %v304 = vadd.f32 0.0, %v303
      %v305 = vpop.f32.mrb[0].mxu0
      %v306 = vpop.f32.mrb[0].mxu0
      %v307 = vadd.f32 0.0, %v306
      %v308 = vpop.f32.mrb[0].mxu0
      %309 = vmatprep.mubr.bf16.mxu0 0
      %310 = vmatmul.mubr.bf16.gmra.mrb[0].mxu0 %v239
      %v311 = vpop.f32.mrb[0].mxu0
      %v312 = vadd.f32 0.0, %v311
      %v313 = vpop.f32.mrb[0].mxu0
      %v314 = vpop.f32.mrb[0].mxu0
      %v315 = vadd.f32 0.0, %v314
      %v316 = vpop.f32.mrb[0].mxu0
      %317 = vmatprep.mubr.bf16.mxu0 0
      %318 = vmatmul.mubr.bf16.gmra.mrb[0].mxu0 %v242
      %v319 = vpop.f32.mrb[0].mxu0
      %v320 = vadd.f32 0.0, %v319
      %v321 = vpop.f32.mrb[0].mxu0
      %v322 = vpop.f32.mrb[0].mxu0
      %v323 = vadd.f32 0.0, %v322
      %v324 = vpop.f32.mrb[0].mxu0
      %325 = vmatprep.mubr.bf16.mxu0 0
      %326 = vmatmul.mubr.bf16.gmra.mrb[0].mxu0 %v245
      %v327 = vpop.f32.mrb[0].mxu0
      %v328 = vadd.f32 0.0, %v327
      %v329 = vpop.f32.mrb[0].mxu0
      %v330 = vpop.f32.mrb[0].mxu0
      %v331 = vadd.f32 0.0, %v330
      %v332 = vpop.f32.mrb[0].mxu0
      %333 = vmatprep.mubr.bf16.mxu0 0
      %334 = vmatmul.mubr.bf16.gmra.mrb[0].mxu0 %v248
      %v335 = vpop.f32.mrb[0].mxu0
      %v336 = vadd.f32 0.0, %v335
      %v337 = vpop.f32.mrb[0].mxu0
      %v338 = vpop.f32.mrb[0].mxu0
      %v339 = vadd.f32 0.0, %v338
      %v340 = vpop.f32.mrb[0].mxu0
      %341 = vmatprep.mubr.bf16.mxu0 0
      %342 = vmatmul.mubr.bf16.gmra.mrb[0].mxu0 %v251
      %v343 = vpop.f32.mrb[0].mxu0
      %v344 = vadd.f32 0.0, %v343
      %v345 = vpop.f32.mrb[0].mxu0
      %v346 = vpop.f32.mrb[0].mxu0
      %v347 = vadd.f32 0.0, %v346
      %v348 = vpop.f32.mrb[0].mxu0
      %349 = vdwg.mxu0
      %v350 = vld [vmem:[#allocation8] sm:$0x1]
      %v351 = vld [vmem:[#allocation9] sm:$0x1]
      %v352 = vadd.f32 %v288, %v291
      %v353 = vadd.f32 %v352, %v296
      %v354 = vadd.f32 %v353, %v299
      %v355 = vadd.f32 %v354, %v304
      %v356 = vadd.f32 %v355, %v307
      %v357 = vadd.f32 %v356, %v312
      %v358 = vadd.f32 %v357, %v315
      %v359 = vadd.f32 %v358, %v320
      %v360 = vadd.f32 %v359, %v323
      %v361 = vadd.f32 %v360, %v328
      %v362 = vadd.f32 %v361, %v331
      %v363 = vadd.f32 %v362, %v336
      %v364 = vadd.f32 %v363, %v339
      %v365 = vadd.f32 %v364, %v344
      %v366 = vadd.f32 %v365, %v347
      %v367 = vrot.slane %v366, 4
      %v368 = vadd.f32 %v366, %v367
      %v369 = vrot.slane %v368, 2
      %v370 = vadd.f32 %v368, %v369
      %v371 = vrot.slane %v370, 1
      %v372 = vadd.f32 %v370, %v371
      %v373 = vmul.f32 %v372, 0.0078125
      %v374 = vmul.f32 %v288, %v288
      %v375 = vmul.f32 %v291, %v291
      %v376 = vmul.f32 %v296, %v296
      %v377 = vmul.f32 %v299, %v299
      %v378 = vmul.f32 %v304, %v304
      %v379 = vmul.f32 %v307, %v307
      %v380 = vmul.f32 %v312, %v312
      %v381 = vmul.f32 %v315, %v315
      %v382 = vmul.f32 %v320, %v320
      %v383 = vmul.f32 %v323, %v323
      %v384 = vmul.f32 %v328, %v328
      %v385 = vmul.f32 %v331, %v331
      %v386 = vmul.f32 %v336, %v336
      %v387 = vmul.f32 %v339, %v339
      %v388 = vmul.f32 %v344, %v344
      %v389 = vmul.f32 %v347, %v347
      %v390 = vadd.f32 %v374, %v375
      %v391 = vadd.f32 %v390, %v376
      %v392 = vadd.f32 %v391, %v377
      %v393 = vadd.f32 %v392, %v378
      %v394 = vadd.f32 %v393, %v379
      %v395 = vadd.f32 %v394, %v380
      %v396 = vadd.f32 %v395, %v381
      %v397 = vadd.f32 %v396, %v382
      %v398 = vadd.f32 %v397, %v383
      %v399 = vadd.f32 %v398, %v384
      %v400 = vadd.f32 %v399, %v385
      %v401 = vadd.f32 %v400, %v386
      %v402 = vadd.f32 %v401, %v387
      %v403 = vadd.f32 %v402, %v388
      %v404 = vadd.f32 %v403, %v389
      %v405 = vrot.slane %v404, 4
      %v406 = vadd.f32 %v404, %v405
      %v407 = vrot.slane %v406, 2
      %v408 = vadd.f32 %v406, %v407
      %v409 = vrot.slane %v408, 1
      %v410 = vadd.f32 %v408, %v409
      %v411 = vmul.f32 %v410, 0.0078125
      %v412 = vmul.f32 %v373, %v373
      %v413 = vsub.f32 %v411, %v412
      %v414 = vmax.f32 %v413, 0.0
      %v415 = vadd.f32 %v414, 1e-05
      %v416 = vrsqrt.pop %v415
      %v417 = vmul.f32 %v350, %v416
      %v418 = vmul.f32 %v373, %v417
      %v419 = vsub.f32 %v351, %v418
      %v421 = vlaneseq
      %v422 = vshrl.u32 %v421, 7
      %v423 = vsub.s32 0, %v422
      %v424 = vrot.slane %v417, %v423
      %v426 = vmul.f32 %v288, %v424
      %v427 = vmul.f32 %v291, %v424
      %v428 = vmul.f32 %v296, %v424
      %v429 = vmul.f32 %v299, %v424
      %v430 = vmul.f32 %v304, %v424
      %v431 = vmul.f32 %v307, %v424
      %v432 = vmul.f32 %v312, %v424
      %v433 = vmul.f32 %v315, %v424
      %v434 = vmul.f32 %v320, %v424
      %v435 = vmul.f32 %v323, %v424
      %v436 = vmul.f32 %v328, %v424
      %v437 = vmul.f32 %v331, %v424
      %v438 = vmul.f32 %v336, %v424
      %v439 = vmul.f32 %v339, %v424
      %v440 = vmul.f32 %v344, %v424
      %v441 = vmul.f32 %v347, %v424
      %v443 = vlaneseq
      %v444 = vshrl.u32 %v443, 7
      %v445 = vsub.s32 0, %v444
      %v446 = vrot.slane %v419, %v445
      %v448 = vadd.f32 %v426, %v446
      %v449 = vadd.f32 %v427, %v446
      %v450 = vadd.f32 %v428, %v446
      %v451 = vadd.f32 %v429, %v446
      %v452 = vadd.f32 %v430, %v446
      %v453 = vadd.f32 %v431, %v446
      %v454 = vadd.f32 %v432, %v446
      %v455 = vadd.f32 %v433, %v446
      %v456 = vadd.f32 %v434, %v446
      %v457 = vadd.f32 %v435, %v446
      %v458 = vadd.f32 %v436, %v446
      %v459 = vadd.f32 %v437, %v446
      %v460 = vadd.f32 %v438, %v446
      %v461 = vadd.f32 %v439, %v446
      %v462 = vadd.f32 %v440, %v446
      %v463 = vadd.f32 %v441, %v446
      %v464 = vmul.f32 %v448, 0.2
      %v465 = vmul.f32 %v449, 0.2
      %v466 = vmul.f32 %v450, 0.2
      %v467 = vmul.f32 %v451, 0.2
      %v468 = vmul.f32 %v452, 0.2
      %v469 = vmul.f32 %v453, 0.2
      %v470 = vmul.f32 %v454, 0.2
      %v471 = vmul.f32 %v455, 0.2
      %v472 = vmul.f32 %v456, 0.2
      %v473 = vmul.f32 %v457, 0.2
      %v474 = vmul.f32 %v458, 0.2
      %v475 = vmul.f32 %v459, 0.2
      %v476 = vmul.f32 %v460, 0.2
      %v477 = vmul.f32 %v461, 0.2
      %v478 = vmul.f32 %v462, 0.2
      %v479 = vmul.f32 %v463, 0.2
      %v480 = vmax.f32 %v448, %v464
      %v481 = vmax.f32 %v449, %v465
      %v482 = vmax.f32 %v450, %v466
      %v483 = vmax.f32 %v451, %v467
      %v484 = vmax.f32 %v452, %v468
      %v485 = vmax.f32 %v453, %v469
      %v486 = vmax.f32 %v454, %v470
      %v487 = vmax.f32 %v455, %v471
      %v488 = vmax.f32 %v456, %v472
      %v489 = vmax.f32 %v457, %v473
      %v490 = vmax.f32 %v458, %v474
      %v491 = vmax.f32 %v459, %v475
      %v492 = vmax.f32 %v460, %v476
      %v493 = vmax.f32 %v461, %v477
      %v494 = vmax.f32 %v462, %v478
      %v495 = vmax.f32 %v463, %v479
      %v496 = vpack.c.bf16 %v481, %v480
      %v497 = vpack.c.bf16 %v483, %v482
      %v498 = vpack.c.bf16 %v485, %v484
      %v499 = vpack.c.bf16 %v487, %v486
      %v500 = vpack.c.bf16 %v489, %v488
      %v501 = vpack.c.bf16 %v491, %v490
      %v502 = vpack.c.bf16 %v493, %v492
      %v503 = vpack.c.bf16 %v495, %v494
      %v504 = vld [vmem:[#allocation11] sm:$0xf]
      %v505 = vld [vmem:[#allocation11 + $0x4] sm:$0xf]
      %v506 = vld [vmem:[#allocation11 + $0x8] sm:$0xf]
      %v507 = vld [vmem:[#allocation11 + $0xc] sm:$0xf]
      %v508 = vld [vmem:[#allocation11 + $0x10] sm:$0xf]
      %v509 = vld [vmem:[#allocation11 + $0x14] sm:$0xf]
      %v510 = vld [vmem:[#allocation11 + $0x18] sm:$0xf]
      %v511 = vld [vmem:[#allocation11 + $0x1c] sm:$0xf]
      %v512 = vld [vmem:[#allocation11 + $0x20] sm:$0xf]
      %v513 = vld [vmem:[#allocation11 + $0x24] sm:$0xf]
      %v514 = vld [vmem:[#allocation11 + $0x28] sm:$0xf]
      %v515 = vld [vmem:[#allocation11 + $0x2c] sm:$0xf]
      %v516 = vld [vmem:[#allocation11 + $0x30] sm:$0xf]
      %v517 = vld [vmem:[#allocation11 + $0x34] sm:$0xf]
      %v518 = vld [vmem:[#allocation11 + $0x38] sm:$0xf]
      %v519 = vld [vmem:[#allocation11 + $0x3c] sm:$0xf]
      %v536 = vunpack.c.l.b16 %v504
      %v537 = vunpack.c.l.b16 %v505
      %v538 = vunpack.c.l.b16 %v506
      %v539 = vunpack.c.l.b16 %v507
      %v540 = vunpack.c.l.b16 %v508
      %v541 = vunpack.c.l.b16 %v509
      %v542 = vunpack.c.l.b16 %v510
      %v543 = vunpack.c.l.b16 %v511
      %v544 = vunpack.c.l.b16 %v512
      %v545 = vunpack.c.l.b16 %v513
      %v546 = vunpack.c.l.b16 %v514
      %v547 = vunpack.c.l.b16 %v515
      %v548 = vunpack.c.l.b16 %v516
      %v549 = vunpack.c.l.b16 %v517
      %v550 = vunpack.c.l.b16 %v518
      %v551 = vunpack.c.l.b16 %v519
      %v552 = vpack.c.b16 %v537, %v536
      %v553 = vpack.c.b16 %v539, %v538
      %v554 = vpack.c.b16 %v541, %v540
      %v555 = vpack.c.b16 %v543, %v542
      %v556 = vpack.c.b16 %v545, %v544
      %v557 = vpack.c.b16 %v547, %v546
      %v558 = vpack.c.b16 %v549, %v548
      %v559 = vpack.c.b16 %v551, %v550
      %568 = vmatprep.subr.bf16.mxu0 0
      %569 = vmatpush1.bf16.msra.mxu0 %v552
      %570 = vmatprep.subr.bf16.mxu0 0
      %571 = vmatpush1.bf16.msra.mxu0 %v553
      %572 = vmatprep.subr.bf16.mxu0 0
      %573 = vmatpush1.bf16.msra.mxu0 %v554
      %574 = vmatprep.subr.bf16.mxu0 0
      %575 = vmatpush1.bf16.msra.mxu0 %v555
      %576 = vmatprep.subr.bf16.mxu0 0
      %577 = vmatpush1.bf16.msra.mxu0 %v556
      %578 = vmatprep.subr.bf16.mxu0 0
      %579 = vmatpush1.bf16.msra.mxu0 %v557
      %580 = vmatprep.subr.bf16.mxu0 0
      %581 = vmatpush1.bf16.msra.mxu0 %v558
      %582 = vmatprep.subr.bf16.mxu0 0
      %583 = vmatpush1.bf16.msra.mxu0 %v559
      %584 = vmatprep.subr.bf16.mxu0 0
      %585 = vmatpush1.bf16.msra.mxu0 0
      %586 = vmatprep.subr.bf16.mxu0 0
      %587 = vmatpush1.bf16.msra.mxu0 0
      %588 = vmatprep.subr.bf16.mxu0 0
      %589 = vmatpush1.bf16.msra.mxu0 0
      %590 = vmatprep.subr.bf16.mxu0 0
      %591 = vmatpush1.bf16.msra.mxu0 0
      %592 = vmatprep.subr.bf16.mxu0 0
      %593 = vmatpush1.bf16.msra.mxu0 0
      %594 = vmatprep.subr.bf16.mxu0 0
      %595 = vmatpush1.bf16.msra.mxu0 0
      %596 = vmatprep.subr.bf16.mxu0 0
      %597 = vmatpush1.bf16.msra.mxu0 0
      %598 = vmatprep.subr.bf16.mxu0 0
      %599 = vmatpush1.bf16.msra.mxu0 0
      %600 = vmatprep.mubr.bf16.mxu0 0
      %601 = vmatmul.mubr.bf16.gmra.mrb[0].mxu0 %v496
      %v602 = vpop.f32.mrb[0].mxu0
      %v603 = vadd.f32 0.0, %v602
      %v604 = vpop.f32.mrb[0].mxu0
      %v605 = vpop.f32.mrb[0].mxu0
      %v606 = vadd.f32 0.0, %v605
      %v607 = vpop.f32.mrb[0].mxu0
      %608 = vmatprep.mubr.bf16.mxu0 0
      %609 = vmatmul.mubr.bf16.gmra.mrb[0].mxu0 %v497
      %v610 = vpop.f32.mrb[0].mxu0
      %v611 = vadd.f32 0.0, %v610
      %v612 = vpop.f32.mrb[0].mxu0
      %v613 = vpop.f32.mrb[0].mxu0
      %v614 = vadd.f32 0.0, %v613
      %v615 = vpop.f32.mrb[0].mxu0
      %616 = vmatprep.mubr.bf16.mxu0 0
      %617 = vmatmul.mubr.bf16.gmra.mrb[0].mxu0 %v498
      %v618 = vpop.f32.mrb[0].mxu0
      %v619 = vadd.f32 0.0, %v618
      %v620 = vpop.f32.mrb[0].mxu0
      %v621 = vpop.f32.mrb[0].mxu0
      %v622 = vadd.f32 0.0, %v621
      %v623 = vpop.f32.mrb[0].mxu0
      %624 = vmatprep.mubr.bf16.mxu0 0
      %625 = vmatmul.mubr.bf16.gmra.mrb[0].mxu0 %v499
      %v626 = vpop.f32.mrb[0].mxu0
      %v627 = vadd.f32 0.0, %v626
      %v628 = vpop.f32.mrb[0].mxu0
      %v629 = vpop.f32.mrb[0].mxu0
      %v630 = vadd.f32 0.0, %v629
      %v631 = vpop.f32.mrb[0].mxu0
      %632 = vmatprep.mubr.bf16.mxu0 0
      %633 = vmatmul.mubr.bf16.gmra.mrb[0].mxu0 %v500
      %v634 = vpop.f32.mrb[0].mxu0
      %v635 = vadd.f32 0.0, %v634
      %v636 = vpop.f32.mrb[0].mxu0
      %v637 = vpop.f32.mrb[0].mxu0
      %v638 = vadd.f32 0.0, %v637
      %v639 = vpop.f32.mrb[0].mxu0
      %640 = vmatprep.mubr.bf16.mxu0 0
      %641 = vmatmul.mubr.bf16.gmra.mrb[0].mxu0 %v501
      %v642 = vpop.f32.mrb[0].mxu0
      %v643 = vadd.f32 0.0, %v642
      %v644 = vpop.f32.mrb[0].mxu0
      %v645 = vpop.f32.mrb[0].mxu0
      %v646 = vadd.f32 0.0, %v645
      %v647 = vpop.f32.mrb[0].mxu0
      %648 = vmatprep.mubr.bf16.mxu0 0
      %649 = vmatmul.mubr.bf16.gmra.mrb[0].mxu0 %v502
      %v650 = vpop.f32.mrb[0].mxu0
      %v651 = vadd.f32 0.0, %v650
      %v652 = vpop.f32.mrb[0].mxu0
      %v653 = vpop.f32.mrb[0].mxu0
      %v654 = vadd.f32 0.0, %v653
      %v655 = vpop.f32.mrb[0].mxu0
      %656 = vmatprep.mubr.bf16.mxu0 0
      %657 = vmatmul.mubr.bf16.gmra.mrb[0].mxu0 %v503
      %v658 = vpop.f32.mrb[0].mxu0
      %v659 = vadd.f32 0.0, %v658
      %v660 = vpop.f32.mrb[0].mxu0
      %v661 = vpop.f32.mrb[0].mxu0
      %v662 = vadd.f32 0.0, %v661
      %v663 = vpop.f32.mrb[0].mxu0
      %664 = vdwg.mxu0
      %v665 = vld [vmem:[#allocation12] sm:$0x1]
      %v666 = vld [vmem:[#allocation14] sm:$0x1]
      %v667 = vadd.f32 %v603, %v606
      %v668 = vadd.f32 %v667, %v611
      %v669 = vadd.f32 %v668, %v614
      %v670 = vadd.f32 %v669, %v619
      %v671 = vadd.f32 %v670, %v622
      %v672 = vadd.f32 %v671, %v627
      %v673 = vadd.f32 %v672, %v630
      %v674 = vadd.f32 %v673, %v635
      %v675 = vadd.f32 %v674, %v638
      %v676 = vadd.f32 %v675, %v643
      %v677 = vadd.f32 %v676, %v646
      %v678 = vadd.f32 %v677, %v651
      %v679 = vadd.f32 %v678, %v654
      %v680 = vadd.f32 %v679, %v659
      %v681 = vadd.f32 %v680, %v662
      %v682 = vrot.slane %v681, 4
      %v683 = vadd.f32 %v681, %v682
      %v684 = vrot.slane %v683, 2
      %v685 = vadd.f32 %v683, %v684
      %v686 = vrot.slane %v685, 1
      %v687 = vadd.f32 %v685, %v686
      %v688 = vmul.f32 %v687, 0.0078125
      %v689 = vmul.f32 %v603, %v603
      %v690 = vmul.f32 %v606, %v606
      %v691 = vmul.f32 %v611, %v611
      %v692 = vmul.f32 %v614, %v614
      %v693 = vmul.f32 %v619, %v619
      %v694 = vmul.f32 %v622, %v622
      %v695 = vmul.f32 %v627, %v627
      %v696 = vmul.f32 %v630, %v630
      %v697 = vmul.f32 %v635, %v635
      %v698 = vmul.f32 %v638, %v638
      %v699 = vmul.f32 %v643, %v643
      %v700 = vmul.f32 %v646, %v646
      %v701 = vmul.f32 %v651, %v651
      %v702 = vmul.f32 %v654, %v654
      %v703 = vmul.f32 %v659, %v659
      %v704 = vmul.f32 %v662, %v662
      %v705 = vadd.f32 %v689, %v690
      %v706 = vadd.f32 %v705, %v691
      %v707 = vadd.f32 %v706, %v692
      %v708 = vadd.f32 %v707, %v693
      %v709 = vadd.f32 %v708, %v694
      %v710 = vadd.f32 %v709, %v695
      %v711 = vadd.f32 %v710, %v696
      %v712 = vadd.f32 %v711, %v697
      %v713 = vadd.f32 %v712, %v698
      %v714 = vadd.f32 %v713, %v699
      %v715 = vadd.f32 %v714, %v700
      %v716 = vadd.f32 %v715, %v701
      %v717 = vadd.f32 %v716, %v702
      %v718 = vadd.f32 %v717, %v703
      %v719 = vadd.f32 %v718, %v704
      %v720 = vrot.slane %v719, 4
      %v721 = vadd.f32 %v719, %v720
      %v722 = vrot.slane %v721, 2
      %v723 = vadd.f32 %v721, %v722
      %v724 = vrot.slane %v723, 1
      %v725 = vadd.f32 %v723, %v724
      %v726 = vmul.f32 %v725, 0.0078125
      %v727 = vmul.f32 %v688, %v688
      %v728 = vsub.f32 %v726, %v727
      %v729 = vmax.f32 %v728, 0.0
      %v730 = vadd.f32 %v729, 1e-05
      %v731 = vrsqrt.pop %v730
      %v732 = vmul.f32 %v665, %v731
      %v733 = vmul.f32 %v688, %v732
      %v734 = vsub.f32 %v666, %v733
      %v736 = vlaneseq
      %v737 = vshrl.u32 %v736, 7
      %v738 = vsub.s32 0, %v737
      %v739 = vrot.slane %v732, %v738
      %v741 = vmul.f32 %v603, %v739
      %v742 = vmul.f32 %v606, %v739
      %v743 = vmul.f32 %v611, %v739
      %v744 = vmul.f32 %v614, %v739
      %v745 = vmul.f32 %v619, %v739
      %v746 = vmul.f32 %v622, %v739
      %v747 = vmul.f32 %v627, %v739
      %v748 = vmul.f32 %v630, %v739
      %v749 = vmul.f32 %v635, %v739
      %v750 = vmul.f32 %v638, %v739
      %v751 = vmul.f32 %v643, %v739
      %v752 = vmul.f32 %v646, %v739
      %v753 = vmul.f32 %v651, %v739
      %v754 = vmul.f32 %v654, %v739
      %v755 = vmul.f32 %v659, %v739
      %v756 = vmul.f32 %v662, %v739
      %v758 = vlaneseq
      %v759 = vshrl.u32 %v758, 7
      %v760 = vsub.s32 0, %v759
      %v761 = vrot.slane %v734, %v760
      %v763 = vadd.f32 %v741, %v761
      %v764 = vadd.f32 %v742, %v761
      %v765 = vadd.f32 %v743, %v761
      %v766 = vadd.f32 %v744, %v761
      %v767 = vadd.f32 %v745, %v761
      %v768 = vadd.f32 %v746, %v761
      %v769 = vadd.f32 %v747, %v761
      %v770 = vadd.f32 %v748, %v761
      %v771 = vadd.f32 %v749, %v761
      %v772 = vadd.f32 %v750, %v761
      %v773 = vadd.f32 %v751, %v761
      %v774 = vadd.f32 %v752, %v761
      %v775 = vadd.f32 %v753, %v761
      %v776 = vadd.f32 %v754, %v761
      %v777 = vadd.f32 %v755, %v761
      %v778 = vadd.f32 %v756, %v761
      %v779 = vmul.f32 %v763, 0.2
      %v780 = vmul.f32 %v764, 0.2
      %v781 = vmul.f32 %v765, 0.2
      %v782 = vmul.f32 %v766, 0.2
      %v783 = vmul.f32 %v767, 0.2
      %v784 = vmul.f32 %v768, 0.2
      %v785 = vmul.f32 %v769, 0.2
      %v786 = vmul.f32 %v770, 0.2
      %v787 = vmul.f32 %v771, 0.2
      %v788 = vmul.f32 %v772, 0.2
      %v789 = vmul.f32 %v773, 0.2
      %v790 = vmul.f32 %v774, 0.2
      %v791 = vmul.f32 %v775, 0.2
      %v792 = vmul.f32 %v776, 0.2
      %v793 = vmul.f32 %v777, 0.2
      %v794 = vmul.f32 %v778, 0.2
      %v795 = vmax.f32 %v763, %v779
      %v796 = vmax.f32 %v764, %v780
      %v797 = vmax.f32 %v765, %v781
      %v798 = vmax.f32 %v766, %v782
      %v799 = vmax.f32 %v767, %v783
      %v800 = vmax.f32 %v768, %v784
      %v801 = vmax.f32 %v769, %v785
      %v802 = vmax.f32 %v770, %v786
      %v803 = vmax.f32 %v771, %v787
      %v804 = vmax.f32 %v772, %v788
      %v805 = vmax.f32 %v773, %v789
      %v806 = vmax.f32 %v774, %v790
      %v807 = vmax.f32 %v775, %v791
      %v808 = vmax.f32 %v776, %v792
      %v809 = vmax.f32 %v777, %v793
      %v810 = vmax.f32 %v778, %v794
      %v811 = vpack.c.bf16 %v796, %v795
      %v812 = vpack.c.bf16 %v798, %v797
      %v813 = vpack.c.bf16 %v800, %v799
      %v814 = vpack.c.bf16 %v802, %v801
      %v815 = vpack.c.bf16 %v804, %v803
      %v816 = vpack.c.bf16 %v806, %v805
      %v817 = vpack.c.bf16 %v808, %v807
      %v818 = vpack.c.bf16 %v810, %v809
      %v819 = vld [vmem:[#allocation15] sm:$0xf]
      %v820 = vld [vmem:[#allocation15 + $0x4] sm:$0xf]
      %v821 = vld [vmem:[#allocation15 + $0x8] sm:$0xf]
      %v822 = vld [vmem:[#allocation15 + $0xc] sm:$0xf]
      %v823 = vld [vmem:[#allocation15 + $0x10] sm:$0xf]
      %v824 = vld [vmem:[#allocation15 + $0x14] sm:$0xf]
      %v825 = vld [vmem:[#allocation15 + $0x18] sm:$0xf]
      %v826 = vld [vmem:[#allocation15 + $0x1c] sm:$0xf]
      %v827 = vld [vmem:[#allocation15 + $0x20] sm:$0xf]
      %v828 = vld [vmem:[#allocation15 + $0x24] sm:$0xf]
      %v829 = vld [vmem:[#allocation15 + $0x28] sm:$0xf]
      %v830 = vld [vmem:[#allocation15 + $0x2c] sm:$0xf]
      %v831 = vld [vmem:[#allocation15 + $0x30] sm:$0xf]
      %v832 = vld [vmem:[#allocation15 + $0x34] sm:$0xf]
      %v833 = vld [vmem:[#allocation15 + $0x38] sm:$0xf]
      %v834 = vld [vmem:[#allocation15 + $0x3c] sm:$0xf]
      %v851 = vunpack.c.l.b16 %v819
      %v852 = vunpack.c.l.b16 %v820
      %v853 = vunpack.c.l.b16 %v821
      %v854 = vunpack.c.l.b16 %v822
      %v855 = vunpack.c.l.b16 %v823
      %v856 = vunpack.c.l.b16 %v824
      %v857 = vunpack.c.l.b16 %v825
      %v858 = vunpack.c.l.b16 %v826
      %v859 = vunpack.c.l.b16 %v827
      %v860 = vunpack.c.l.b16 %v828
      %v861 = vunpack.c.l.b16 %v829
      %v862 = vunpack.c.l.b16 %v830
      %v863 = vunpack.c.l.b16 %v831
      %v864 = vunpack.c.l.b16 %v832
      %v865 = vunpack.c.l.b16 %v833
      %v866 = vunpack.c.l.b16 %v834
      %v867 = vpack.c.b16 %v852, %v851
      %v868 = vpack.c.b16 %v854, %v853
      %v869 = vpack.c.b16 %v856, %v855
      %v870 = vpack.c.b16 %v858, %v857
      %v871 = vpack.c.b16 %v860, %v859
      %v872 = vpack.c.b16 %v862, %v861
      %v873 = vpack.c.b16 %v864, %v863
      %v874 = vpack.c.b16 %v866, %v865
      %883 = vmatprep.subr.bf16.mxu0 0
      %884 = vmatpush1.bf16.msra.mxu0 %v867
      %885 = vmatprep.subr.bf16.mxu0 0
      %886 = vmatpush1.bf16.msra.mxu0 %v868
      %887 = vmatprep.subr.bf16.mxu0 0
      %888 = vmatpush1.bf16.msra.mxu0 %v869
      %889 = vmatprep.subr.bf16.mxu0 0
      %890 = vmatpush1.bf16.msra.mxu0 %v870
      %891 = vmatprep.subr.bf16.mxu0 0
      %892 = vmatpush1.bf16.msra.mxu0 %v871
      %893 = vmatprep.subr.bf16.mxu0 0
      %894 = vmatpush1.bf16.msra.mxu0 %v872
      %895 = vmatprep.subr.bf16.mxu0 0
      %896 = vmatpush1.bf16.msra.mxu0 %v873
      %897 = vmatprep.subr.bf16.mxu0 0
      %898 = vmatpush1.bf16.msra.mxu0 %v874
      %899 = vmatprep.subr.bf16.mxu0 0
      %900 = vmatpush1.bf16.msra.mxu0 0
      %901 = vmatprep.subr.bf16.mxu0 0
      %902 = vmatpush1.bf16.msra.mxu0 0
      %903 = vmatprep.subr.bf16.mxu0 0
      %904 = vmatpush1.bf16.msra.mxu0 0
      %905 = vmatprep.subr.bf16.mxu0 0
      %906 = vmatpush1.bf16.msra.mxu0 0
      %907 = vmatprep.subr.bf16.mxu0 0
      %908 = vmatpush1.bf16.msra.mxu0 0
      %909 = vmatprep.subr.bf16.mxu0 0
      %910 = vmatpush1.bf16.msra.mxu0 0
      %911 = vmatprep.subr.bf16.mxu0 0
      %912 = vmatpush1.bf16.msra.mxu0 0
      %913 = vmatprep.subr.bf16.mxu0 0
      %914 = vmatpush1.bf16.msra.mxu0 0
      %915 = vmatprep.mubr.bf16.mxu0 0
      %916 = vmatmul.mubr.bf16.gmra.mrb[0].mxu0 %v811
      %v917 = vpop.f32.mrb[0].mxu0
      %v918 = vadd.f32 0.0, %v917
      %v919 = vpop.f32.mrb[0].mxu0
      %v920 = vpop.f32.mrb[0].mxu0
      %v921 = vadd.f32 0.0, %v920
      %v922 = vpop.f32.mrb[0].mxu0
      %923 = vmatprep.mubr.bf16.mxu0 0
      %924 = vmatmul.mubr.bf16.gmra.mrb[0].mxu0 %v812
      %v925 = vpop.f32.mrb[0].mxu0
      %v926 = vadd.f32 0.0, %v925
      %v927 = vpop.f32.mrb[0].mxu0
      %v928 = vpop.f32.mrb[0].mxu0
      %v929 = vadd.f32 0.0, %v928
      %v930 = vpop.f32.mrb[0].mxu0
      %931 = vmatprep.mubr.bf16.mxu0 0
      %932 = vmatmul.mubr.bf16.gmra.mrb[0].mxu0 %v813
      %v933 = vpop.f32.mrb[0].mxu0
      %v934 = vadd.f32 0.0, %v933
      %v935 = vpop.f32.mrb[0].mxu0
      %v936 = vpop.f32.mrb[0].mxu0
      %v937 = vadd.f32 0.0, %v936
      %v938 = vpop.f32.mrb[0].mxu0
      %939 = vmatprep.mubr.bf16.mxu0 0
      %940 = vmatmul.mubr.bf16.gmra.mrb[0].mxu0 %v814
      %v941 = vpop.f32.mrb[0].mxu0
      %v942 = vadd.f32 0.0, %v941
      %v943 = vpop.f32.mrb[0].mxu0
      %v944 = vpop.f32.mrb[0].mxu0
      %v945 = vadd.f32 0.0, %v944
      %v946 = vpop.f32.mrb[0].mxu0
      %947 = vmatprep.mubr.bf16.mxu0 0
      %948 = vmatmul.mubr.bf16.gmra.mrb[0].mxu0 %v815
      %v949 = vpop.f32.mrb[0].mxu0
      %v950 = vadd.f32 0.0, %v949
      %v951 = vpop.f32.mrb[0].mxu0
      %v952 = vpop.f32.mrb[0].mxu0
      %v953 = vadd.f32 0.0, %v952
      %v954 = vpop.f32.mrb[0].mxu0
      %955 = vmatprep.mubr.bf16.mxu0 0
      %956 = vmatmul.mubr.bf16.gmra.mrb[0].mxu0 %v816
      %v957 = vpop.f32.mrb[0].mxu0
      %v958 = vadd.f32 0.0, %v957
      %v959 = vpop.f32.mrb[0].mxu0
      %v960 = vpop.f32.mrb[0].mxu0
      %v961 = vadd.f32 0.0, %v960
      %v962 = vpop.f32.mrb[0].mxu0
      %963 = vmatprep.mubr.bf16.mxu0 0
      %964 = vmatmul.mubr.bf16.gmra.mrb[0].mxu0 %v817
      %v965 = vpop.f32.mrb[0].mxu0
      %v966 = vadd.f32 0.0, %v965
      %v967 = vpop.f32.mrb[0].mxu0
      %v968 = vpop.f32.mrb[0].mxu0
      %v969 = vadd.f32 0.0, %v968
      %v970 = vpop.f32.mrb[0].mxu0
      %971 = vmatprep.mubr.bf16.mxu0 0
      %972 = vmatmul.mubr.bf16.gmra.mrb[0].mxu0 %v818
      %v973 = vpop.f32.mrb[0].mxu0
      %v974 = vadd.f32 0.0, %v973
      %v975 = vpop.f32.mrb[0].mxu0
      %v976 = vpop.f32.mrb[0].mxu0
      %v977 = vadd.f32 0.0, %v976
      %v978 = vpop.f32.mrb[0].mxu0
      %979 = vdwg.mxu0
      %v980 = vld [vmem:[#allocation17] sm:$0x1]
      %v981 = vld [vmem:[#allocation18] sm:$0x1]
      %v982 = vadd.f32 %v918, %v921
      %v983 = vadd.f32 %v982, %v926
      %v984 = vadd.f32 %v983, %v929
      %v985 = vadd.f32 %v984, %v934
      %v986 = vadd.f32 %v985, %v937
      %v987 = vadd.f32 %v986, %v942
      %v988 = vadd.f32 %v987, %v945
      %v989 = vadd.f32 %v988, %v950
      %v990 = vadd.f32 %v989, %v953
      %v991 = vadd.f32 %v990, %v958
      %v992 = vadd.f32 %v991, %v961
      %v993 = vadd.f32 %v992, %v966
      %v994 = vadd.f32 %v993, %v969
      %v995 = vadd.f32 %v994, %v974
      %v996 = vadd.f32 %v995, %v977
      %v997 = vrot.slane %v996, 4
      %v998 = vadd.f32 %v996, %v997
      %v999 = vrot.slane %v998, 2
      %v1000 = vadd.f32 %v998, %v999
      %v1001 = vrot.slane %v1000, 1
      %v1002 = vadd.f32 %v1000, %v1001
      %v1003 = vmul.f32 %v1002, 0.0078125
      %v1004 = vmul.f32 %v918, %v918
      %v1005 = vmul.f32 %v921, %v921
      %v1006 = vmul.f32 %v926, %v926
      %v1007 = vmul.f32 %v929, %v929
      %v1008 = vmul.f32 %v934, %v934
      %v1009 = vmul.f32 %v937, %v937
      %v1010 = vmul.f32 %v942, %v942
      %v1011 = vmul.f32 %v945, %v945
      %v1012 = vmul.f32 %v950, %v950
      %v1013 = vmul.f32 %v953, %v953
      %v1014 = vmul.f32 %v958, %v958
      %v1015 = vmul.f32 %v961, %v961
      %v1016 = vmul.f32 %v966, %v966
      %v1017 = vmul.f32 %v969, %v969
      %v1018 = vmul.f32 %v974, %v974
      %v1019 = vmul.f32 %v977, %v977
      %v1020 = vadd.f32 %v1004, %v1005
      %v1021 = vadd.f32 %v1020, %v1006
      %v1022 = vadd.f32 %v1021, %v1007
      %v1023 = vadd.f32 %v1022, %v1008
      %v1024 = vadd.f32 %v1023, %v1009
      %v1025 = vadd.f32 %v1024, %v1010
      %v1026 = vadd.f32 %v1025, %v1011
      %v1027 = vadd.f32 %v1026, %v1012
      %v1028 = vadd.f32 %v1027, %v1013
      %v1029 = vadd.f32 %v1028, %v1014
      %v1030 = vadd.f32 %v1029, %v1015
      %v1031 = vadd.f32 %v1030, %v1016
      %v1032 = vadd.f32 %v1031, %v1017
      %v1033 = vadd.f32 %v1032, %v1018
      %v1034 = vadd.f32 %v1033, %v1019
      %v1035 = vrot.slane %v1034, 4
      %v1036 = vadd.f32 %v1034, %v1035
      %v1037 = vrot.slane %v1036, 2
      %v1038 = vadd.f32 %v1036, %v1037
      %v1039 = vrot.slane %v1038, 1
      %v1040 = vadd.f32 %v1038, %v1039
      %v1041 = vmul.f32 %v1040, 0.0078125
      %v1042 = vmul.f32 %v1003, %v1003
      %v1043 = vsub.f32 %v1041, %v1042
      %v1044 = vmax.f32 %v1043, 0.0
      %v1045 = vadd.f32 %v1044, 1e-05
      %v1046 = vrsqrt.pop %v1045
      %v1047 = vmul.f32 %v980, %v1046
      %v1048 = vmul.f32 %v1003, %v1047
      %v1049 = vsub.f32 %v981, %v1048
      %v1051 = vlaneseq
      %v1052 = vshrl.u32 %v1051, 7
      %v1053 = vsub.s32 0, %v1052
      %v1054 = vrot.slane %v1047, %v1053
      %v1056 = vmul.f32 %v918, %v1054
      %v1057 = vmul.f32 %v921, %v1054
      %v1058 = vmul.f32 %v926, %v1054
      %v1059 = vmul.f32 %v929, %v1054
      %v1060 = vmul.f32 %v934, %v1054
      %v1061 = vmul.f32 %v937, %v1054
      %v1062 = vmul.f32 %v942, %v1054
      %v1063 = vmul.f32 %v945, %v1054
      %v1064 = vmul.f32 %v950, %v1054
      %v1065 = vmul.f32 %v953, %v1054
      %v1066 = vmul.f32 %v958, %v1054
      %v1067 = vmul.f32 %v961, %v1054
      %v1068 = vmul.f32 %v966, %v1054
      %v1069 = vmul.f32 %v969, %v1054
      %v1070 = vmul.f32 %v974, %v1054
      %v1071 = vmul.f32 %v977, %v1054
      %v1073 = vlaneseq
      %v1074 = vshrl.u32 %v1073, 7
      %v1075 = vsub.s32 0, %v1074
      %v1076 = vrot.slane %v1049, %v1075
      %v1078 = vadd.f32 %v1056, %v1076
      %v1079 = vadd.f32 %v1057, %v1076
      %v1080 = vadd.f32 %v1058, %v1076
      %v1081 = vadd.f32 %v1059, %v1076
      %v1082 = vadd.f32 %v1060, %v1076
      %v1083 = vadd.f32 %v1061, %v1076
      %v1084 = vadd.f32 %v1062, %v1076
      %v1085 = vadd.f32 %v1063, %v1076
      %v1086 = vadd.f32 %v1064, %v1076
      %v1087 = vadd.f32 %v1065, %v1076
      %v1088 = vadd.f32 %v1066, %v1076
      %v1089 = vadd.f32 %v1067, %v1076
      %v1090 = vadd.f32 %v1068, %v1076
      %v1091 = vadd.f32 %v1069, %v1076
      %v1092 = vadd.f32 %v1070, %v1076
      %v1093 = vadd.f32 %v1071, %v1076
      %v1094 = vmul.f32 %v1078, 0.2
      %v1095 = vmul.f32 %v1079, 0.2
      %v1096 = vmul.f32 %v1080, 0.2
      %v1097 = vmul.f32 %v1081, 0.2
      %v1098 = vmul.f32 %v1082, 0.2
      %v1099 = vmul.f32 %v1083, 0.2
      %v1100 = vmul.f32 %v1084, 0.2
      %v1101 = vmul.f32 %v1085, 0.2
      %v1102 = vmul.f32 %v1086, 0.2
      %v1103 = vmul.f32 %v1087, 0.2
      %v1104 = vmul.f32 %v1088, 0.2
      %v1105 = vmul.f32 %v1089, 0.2
      %v1106 = vmul.f32 %v1090, 0.2
      %v1107 = vmul.f32 %v1091, 0.2
      %v1108 = vmul.f32 %v1092, 0.2
      %v1109 = vmul.f32 %v1093, 0.2
      %v1110 = vmax.f32 %v1078, %v1094
      %v1111 = vmax.f32 %v1079, %v1095
      %v1112 = vmax.f32 %v1080, %v1096
      %v1113 = vmax.f32 %v1081, %v1097
      %v1114 = vmax.f32 %v1082, %v1098
      %v1115 = vmax.f32 %v1083, %v1099
      %v1116 = vmax.f32 %v1084, %v1100
      %v1117 = vmax.f32 %v1085, %v1101
      %v1118 = vmax.f32 %v1086, %v1102
      %v1119 = vmax.f32 %v1087, %v1103
      %v1120 = vmax.f32 %v1088, %v1104
      %v1121 = vmax.f32 %v1089, %v1105
      %v1122 = vmax.f32 %v1090, %v1106
      %v1123 = vmax.f32 %v1091, %v1107
      %v1124 = vmax.f32 %v1092, %v1108
      %v1125 = vmax.f32 %v1093, %v1109
      %v1126 = vpack.c.bf16 %v1111, %v1110
      %v1127 = vpack.c.bf16 %v1113, %v1112
      %v1128 = vpack.c.bf16 %v1115, %v1114
      %v1129 = vpack.c.bf16 %v1117, %v1116
      %v1130 = vpack.c.bf16 %v1119, %v1118
      %v1131 = vpack.c.bf16 %v1121, %v1120
      %v1132 = vpack.c.bf16 %v1123, %v1122
      %v1133 = vpack.c.bf16 %v1125, %v1124
      %1134 = vst [vmem:[#allocation2] sm:$0xff] %v1126
      %1135 = vst [vmem:[#allocation2 + $0x8] sm:$0xff] %v1127
      %1136 = vst [vmem:[#allocation2 + $0x10] sm:$0xff] %v1128
      %1137 = vst [vmem:[#allocation2 + $0x18] sm:$0xff] %v1129
      %1138 = vst [vmem:[#allocation2 + $0x20] sm:$0xff] %v1130
      %1139 = vst [vmem:[#allocation2 + $0x28] sm:$0xff] %v1131
      %1140 = vst [vmem:[#allocation2 + $0x30] sm:$0xff] %v1132
      %1141 = vst [vmem:[#allocation2 + $0x38] sm:$0xff] %v1133
    $region101: #{generator_forward.1} parent=1 // pred_fallthru
      _
    %v1142 = vld [vmem:[#allocation2] sm:$0xff]
    %v1143 = vld [vmem:[#allocation2 + $0x8] sm:$0xff]
    %v1144 = vld [vmem:[#allocation2 + $0x10] sm:$0xff]
    %v1145 = vld [vmem:[#allocation2 + $0x18] sm:$0xff]
    %v1146 = vld [vmem:[#allocation2 + $0x20] sm:$0xff]
    %v1147 = vld [vmem:[#allocation2 + $0x28] sm:$0xff]
    %v1148 = vld [vmem:[#allocation2 + $0x30] sm:$0xff]
    %v1149 = vld [vmem:[#allocation2 + $0x38] sm:$0xff]
    %v1150 = vld [vmem:[#allocation20] sm:$0xf]
    %v1151 = vld [vmem:[#allocation20 + $0x4] sm:$0xf]
    %v1152 = vld [vmem:[#allocation20 + $0x8] sm:$0xf]
    %v1153 = vld [vmem:[#allocation20 + $0xc] sm:$0xf]
    %v1154 = vld [vmem:[#allocation20 + $0x10] sm:$0xf]
    %v1155 = vld [vmem:[#allocation20 + $0x14] sm:$0xf]
    %v1156 = vld [vmem:[#allocation20 + $0x18] sm:$0xf]
    %v1157 = vld [vmem:[#allocation20 + $0x1c] sm:$0xf]
    %v1158 = vld [vmem:[#allocation20 + $0x20] sm:$0xf]
    %v1159 = vld [vmem:[#allocation20 + $0x24] sm:$0xf]
    %v1160 = vld [vmem:[#allocation20 + $0x28] sm:$0xf]
    %v1161 = vld [vmem:[#allocation20 + $0x2c] sm:$0xf]
    %v1162 = vld [vmem:[#allocation20 + $0x30] sm:$0xf]
    %v1163 = vld [vmem:[#allocation20 + $0x34] sm:$0xf]
    %v1164 = vld [vmem:[#allocation20 + $0x38] sm:$0xf]
    %v1165 = vld [vmem:[#allocation20 + $0x3c] sm:$0xf]
    %v1166 = vld [vmem:[#allocation21] sm:$0x1]
    %v1168 = vlaneseq
    %v1169 = vshrl.u32 %v1168, 7
    %v1170 = vsub.s32 0, %v1169
    %v1171 = vrot.slane %v1166, %v1170
    %v1189 = vunpack.c.l.b16 %v1150
    %v1190 = vunpack.c.l.b16 %v1151
    %v1191 = vunpack.c.l.b16 %v1152
    %v1192 = vunpack.c.l.b16 %v1153
    %v1193 = vunpack.c.l.b16 %v1154
    %v1194 = vunpack.c.l.b16 %v1155
    %v1195 = vunpack.c.l.b16 %v1156
    %v1196 = vunpack.c.l.b16 %v1157
    %v1197 = vunpack.c.l.b16 %v1158
    %v1198 = vunpack.c.l.b16 %v1159
    %v1199 = vunpack.c.l.b16 %v1160
    %v1200 = vunpack.c.l.b16 %v1161
    %v1201 = vunpack.c.l.b16 %v1162
    %v1202 = vunpack.c.l.b16 %v1163
    %v1203 = vunpack.c.l.b16 %v1164
    %v1204 = vunpack.c.l.b16 %v1165
    %v1205 = vpack.c.b16 %v1190, %v1189
    %v1206 = vpack.c.b16 %v1192, %v1191
    %v1207 = vpack.c.b16 %v1194, %v1193
    %v1208 = vpack.c.b16 %v1196, %v1195
    %v1209 = vpack.c.b16 %v1198, %v1197
    %v1210 = vpack.c.b16 %v1200, %v1199
    %v1211 = vpack.c.b16 %v1202, %v1201
    %v1212 = vpack.c.b16 %v1204, %v1203
    %1221 = vmatprep.subr.bf16.mxu0 0
    %1222 = vmatpush1.bf16.msra.mxu0 %v1205
    %1223 = vmatprep.subr.bf16.mxu0 0
    %1224 = vmatpush1.bf16.msra.mxu0 %v1206
    %1225 = vmatprep.subr.bf16.mxu0 0
    %1226 = vmatpush1.bf16.msra.mxu0 %v1207
    %1227 = vmatprep.subr.bf16.mxu0 0
    %1228 = vmatpush1.bf16.msra.mxu0 %v1208
    %1229 = vmatprep.subr.bf16.mxu0 0
    %1230 = vmatpush1.bf16.msra.mxu0 %v1209
    %1231 = vmatprep.subr.bf16.mxu0 0
    %1232 = vmatpush1.bf16.msra.mxu0 %v1210
    %1233 = vmatprep.subr.bf16.mxu0 0
    %1234 = vmatpush1.bf16.msra.mxu0 %v1211
    %1235 = vmatprep.subr.bf16.mxu0 0
    %1236 = vmatpush1.bf16.msra.mxu0 %v1212
    %1237 = vmatprep.subr.bf16.mxu0 0
    %1238 = vmatpush1.bf16.msra.mxu0 0
    %1239 = vmatprep.subr.bf16.mxu0 0
    %1240 = vmatpush1.bf16.msra.mxu0 0
    %1241 = vmatprep.subr.bf16.mxu0 0
    %1242 = vmatpush1.bf16.msra.mxu0 0
    %1243 = vmatprep.subr.bf16.mxu0 0
    %1244 = vmatpush1.bf16.msra.mxu0 0
    %1245 = vmatprep.subr.bf16.mxu0 0
    %1246 = vmatpush1.bf16.msra.mxu0 0
    %1247 = vmatprep.subr.bf16.mxu0 0
    %1248 = vmatpush1.bf16.msra.mxu0 0
    %1249 = vmatprep.subr.bf16.mxu0 0
    %1250 = vmatpush1.bf16.msra.mxu0 0
    %1251 = vmatprep.subr.bf16.mxu0 0
    %1252 = vmatpush1.bf16.msra.mxu0 0
    %1253 = vmatprep.mubr.bf16.mxu0 0
    %1254 = vmatmul.mubr.bf16.gmra.mrb[0].mxu0 %v1142
    %v1255 = vpop.f32.mrb[0].mxu0
    %v1256 = vadd.f32 %v1171, %v1255
    %v1257 = vpop.f32.mrb[0].mxu0
    %v1258 = vpop.f32.mrb[0].mxu0
    %v1259 = vadd.f32 %v1171, %v1258
    %v1260 = vpop.f32.mrb[0].mxu0
    %1261 = vmatprep.mubr.bf16.mxu0 0
    %1262 = vmatmul.mubr.bf16.gmra.mrb[0].mxu0 %v1143
    %v1263 = vpop.f32.mrb[0].mxu0
    %v1264 = vadd.f32 %v1171, %v1263
    %v1265 = vpop.f32.mrb[0].mxu0
    %v1266 = vpop.f32.mrb[0].mxu0
    %v1267 = vadd.f32 %v1171, %v1266
    %v1268 = vpop.f32.mrb[0].mxu0
    %1269 = vmatprep.mubr.bf16.mxu0 0
    %1270 = vmatmul.mubr.bf16.gmra.mrb[0].mxu0 %v1144
    %v1271 = vpop.f32.mrb[0].mxu0
    %v1272 = vadd.f32 %v1171, %v1271
    %v1273 = vpop.f32.mrb[0].mxu0
    %v1274 = vpop.f32.mrb[0].mxu0
    %v1275 = vadd.f32 %v1171, %v1274
    %v1276 = vpop.f32.mrb[0].mxu0
    %1277 = vmatprep.mubr.bf16.mxu0 0
    %1278 = vmatmul.mubr.bf16.gmra.mrb[0].mxu0 %v1145
    %v1279 = vpop.f32.mrb[0].mxu0
    %v1280 = vadd.f32 %v1171, %v1279
    %v1281 = vpop.f32.mrb[0].mxu0
    %v1282 = vpop.f32.mrb[0].mxu0
    %v1283 = vadd.f32 %v1171, %v1282
    %v1284 = vpop.f32.mrb[0].mxu0
    %1285 = vmatprep.mubr.bf16.mxu0 0
    %1286 = vmatmul.mubr.bf16.gmra.mrb[0].mxu0 %v1146
    %v1287 = vpop.f32.mrb[0].mxu0
    %v1288 = vadd.f32 %v1171, %v1287
    %v1289 = vpop.f32.mrb[0].mxu0
    %v1290 = vpop.f32.mrb[0].mxu0
    %v1291 = vadd.f32 %v1171, %v1290
    %v1292 = vpop.f32.mrb[0].mxu0
    %1293 = vmatprep.mubr.bf16.mxu0 0
    %1294 = vmatmul.mubr.bf16.gmra.mrb[0].mxu0 %v1147
    %v1295 = vpop.f32.mrb[0].mxu0
    %v1296 = vadd.f32 %v1171, %v1295
    %v1297 = vpop.f32.mrb[0].mxu0
    %v1298 = vpop.f32.mrb[0].mxu0
    %v1299 = vadd.f32 %v1171, %v1298
    %v1300 = vpop.f32.mrb[0].mxu0
    %1301 = vmatprep.mubr.bf16.mxu0 0
    %1302 = vmatmul.mubr.bf16.gmra.mrb[0].mxu0 %v1148
    %v1303 = vpop.f32.mrb[0].mxu0
    %v1304 = vadd.f32 %v1171, %v1303
    %v1305 = vpop.f32.mrb[0].mxu0
    %v1306 = vpop.f32.mrb[0].mxu0
    %v1307 = vadd.f32 %v1171, %v1306
    %v1308 = vpop.f32.mrb[0].mxu0
    %1309 = vmatprep.mubr.bf16.mxu0 0
    %1310 = vmatmul.mubr.bf16.gmra.mrb[0].mxu0 %v1149
    %v1311 = vpop.f32.mrb[0].mxu0
    %v1312 = vadd.f32 %v1171, %v1311
    %v1313 = vpop.f32.mrb[0].mxu0
    %v1314 = vpop.f32.mrb[0].mxu0
    %v1315 = vadd.f32 %v1171, %v1314
    %v1316 = vpop.f32.mrb[0].mxu0
    %1317 = vdwg.mxu0
    %v1318 = vtanh.pop %v1256
    %v1319 = vtanh.pop %v1259
    %v1320 = vtanh.pop %v1264
    %v1321 = vtanh.pop %v1267
    %v1322 = vtanh.pop %v1272
    %v1323 = vtanh.pop %v1275
    %v1324 = vtanh.pop %v1280
    %v1325 = vtanh.pop %v1283
    %v1326 = vtanh.pop %v1288
    %v1327 = vtanh.pop %v1291
    %v1328 = vtanh.pop %v1296
    %v1329 = vtanh.pop %v1299
    %v1330 = vtanh.pop %v1304
    %v1331 = vtanh.pop %v1307
    %v1332 = vtanh.pop %v1312
    %v1333 = vtanh.pop %v1315
    %1334 = vst [vmem:[#allocation23] sm:$0xff] %v1318
    %1335 = vst [vmem:[#allocation23 + $0x8] sm:$0xff] %v1319
    %1336 = vst [vmem:[#allocation23 + $0x10] sm:$0xff] %v1320
    %1337 = vst [vmem:[#allocation23 + $0x18] sm:$0xff] %v1321
    %1338 = vst [vmem:[#allocation23 + $0x20] sm:$0xff] %v1322
    %1339 = vst [vmem:[#allocation23 + $0x28] sm:$0xff] %v1323
    %1340 = vst [vmem:[#allocation23 + $0x30] sm:$0xff] %v1324
    %1341 = vst [vmem:[#allocation23 + $0x38] sm:$0xff] %v1325
    %1342 = vst [vmem:[#allocation23 + $0x40] sm:$0xff] %v1326
    %1343 = vst [vmem:[#allocation23 + $0x48] sm:$0xff] %v1327
    %1344 = vst [vmem:[#allocation23 + $0x50] sm:$0xff] %v1328
    %1345 = vst [vmem:[#allocation23 + $0x58] sm:$0xff] %v1329
    %1346 = vst [vmem:[#allocation23 + $0x60] sm:$0xff] %v1330
    %1347 = vst [vmem:[#allocation23 + $0x68] sm:$0xff] %v1331
    %1348 = vst [vmem:[#allocation23 + $0x70] sm:$0xff] %v1332
    %1349 = vst [vmem:[#allocation23 + $0x78] sm:$0xff] %v1333
    // Predicated region
    $region102: #{generator_forward.1} parent=1 // pred_check
      _
    $region103: #{generator_forward.1} parent=1 // pred_check_branch
      %1351 = sbr.rel (0) target = $region105
    $region104: #{generator_forward.1} parent=1 // pred_region
      %s1353 = ssub.s32 2048, 2048
      %1354 = vsyncadd [#allocation5], %s1353
      %s1355 = sshll.u32 [#allocation23], 4
      %s1356 = int_to_ptr.vmem [resolvable:$true] %s1355
      %1361 = dma.vmem_to_hbm [thread:$0]  %s1356, 2048, %s12, [#allocation5], 128, 128, 8
    $region105: #{generator_forward.1} parent=1 // pred_fallthru
      _
    // Predicated region
    $region106: #{generator_forward.1} parent=1 // pred_check
      _
    $region107: #{generator_forward.1} parent=1 // pred_check_branch
      %1363 = sbr.rel (0) target = $region109
    $region108: #{generator_forward.1} parent=1 // pred_region
      %1364 = dma.done [#allocation5], 2048
    $region109: #{generator_forward.1} parent=1 // pred_fallthru
      _
    %1365 = vsyncpa [#allocation4], 1
    %1366 = vsyncpa [#allocation7], 1
    %1367 = vsyncpa [#allocation10], 1
    %1368 = vsyncpa [#allocation13], 1
    %1369 = vsyncpa [#allocation16], 1
    %1370 = vsyncpa [#allocation19], 1
    %1371 = vsyncpa [#allocation22], 1
    %1372 = vsyncpa [#allocation5], 1

</llo_original>
